<compile_context>
chip_gen: v6e
topology: v6e:2x2x1
jax: 0.10.0
libtpu: 0.0.40
codegen_flags: <defaults>
</compile_context>

<pallas_src>
import functools

import numpy as np
import jax
import jax.numpy as jnp
from jax.experimental import pallas as pl
from jax.experimental.pallas import tpu as pltpu

MU = 1.0          # module default mu
FEAT_DIM = 128    # backbone output / projector (identity) dim


def _pick_tk(feat, max_tk=512):
    """Largest K-tile <= max_tk that is a multiple of 128 and divides feat."""
    if feat % 128 != 0:
        return feat            # tiny / odd feature dim: single block
    tk = min(max_tk, feat)
    tk -= tk % 128
    while feat % tk:
        tk -= 128
    return max(tk, 128)


# ----------------------------------------------------------------------------
# Fused kernel: K-tiled backbone matmul for the 4 views + D() loss.
#   x*_ref : [B, tk]  f32 blocks of the flattened views (cast to bf16 in-core)
#   w_ref  : [tk, D]  f32 block of the backbone weight  (cast to bf16 in-core)
#   out    : SMEM f32[3] = [(L1+L2)/mu, L1/mu, L2/mu]   (loss, loss2, loss5)
#   a_*    : VMEM f32[B, D] per-view feature accumulators
#            (z1 = [a_x1; a_ux1], z2 = [a_x2; a_ux2])
# ----------------------------------------------------------------------------
def _spectral_fused_kernel(x1_ref, ux1_ref, x2_ref, ux2_ref, w_ref, out_ref,
                           a_x1, a_ux1, a_x2, a_ux2, *, mu):
    k = pl.program_id(0)
    accs = (a_x1, a_ux1, a_x2, a_ux2)
    x_refs = (x1_ref, ux1_ref, x2_ref, ux2_ref)

    @pl.when(k == 0)
    def _init():
        for a in accs:
            a[...] = jnp.zeros_like(a)

    # In-kernel bf16 cast (VPU) -> bf16 x bf16 MXU matmul, f32 accumulation.
    wb = w_ref[...].astype(jnp.bfloat16)
    for xr, a in zip(x_refs, accs):
        a[...] += jnp.dot(xr[...].astype(jnp.bfloat16), wb,
                          preferred_element_type=jnp.float32)

    @pl.when(k == pl.num_programs(0) - 1)
    def _finalize():
        mu_f = jnp.float32(mu)
        sqrt_mu = jnp.float32(np.sqrt(mu))

        def thresh(z):
            # norm(z) < sqrt(mu)  <=>  ||z||^2 < mu ; normalize via rsqrt (EUP).
            nrm2 = jnp.sum(z * z, axis=1, keepdims=True)
            scale = jnp.where(
                nrm2 < mu_f,
                jnp.float32(1.0),
                sqrt_mu * jax.lax.rsqrt(jnp.maximum(nrm2, jnp.float32(1e-24))))
            return z * scale

        z1a = thresh(a_x1[...])      # labeled,   view 1
        z1b = thresh(a_ux1[...])     # unlabeled, view 1
        z2a = thresh(a_x2[...])      # labeled,   view 2
        z2b = thresh(a_ux2[...])     # unlabeled, view 2

        n = z1a.shape[0] + z1b.shape[0]   # loss batch N = B_l + B_u (static)

        # loss_part1 = -2 * mean(z1*z2) * d == -2 * sum(z1*z2) / N
        prod_a = z1a * z2a
        prod_b = z1b * z2b
        rowdot_a = jnp.sum(prod_a, axis=1, keepdims=True)   # diag blocks of gram
        rowdot_b = jnp.sum(prod_b, axis=1, keepdims=True)
        loss_part1 = -2.0 * (jnp.sum(prod_a) + jnp.sum(prod_b)) / n

        # loss_part2 = mean(off-diag((z1 z2^T)^2)) * N/(N-1)
        #            = (||gram||_F^2 - ||diag||^2) / (N*(N-1))
        # gram is assembled block-wise -> no in-kernel concatenation needed.
        def gram_sq_sum(u, v):
            g = jax.lax.dot_general(u, v, (((1,), (1,)), ((), ())),
                                    preferred_element_type=jnp.float32)
            return jnp.sum(g * g)

        total_sq = (gram_sq_sum(z1a, z2a) + gram_sq_sum(z1a, z2b)
                    + gram_sq_sum(z1b, z2a) + gram_sq_sum(z1b, z2b))
        diag_sq = jnp.sum(rowdot_a * rowdot_a) + jnp.sum(rowdot_b * rowdot_b)
        # NOTE: N == 1 would divide by zero, exactly as in the PyTorch module.
        loss_part2 = (total_sq - diag_sq) / (n * (n - 1))

        inv_mu = jnp.float32(1.0 / mu)
        out_ref[0] = (loss_part1 + loss_part2) * inv_mu
        out_ref[1] = loss_part1 * inv_mu
        out_ref[2] = loss_part2 * inv_mu


def _spectral_fused(x1f, ux1f, x2f, ux2f, w, *, mu):
    """x*f: [B*, F] f32 flattened views (native layout); w: [F, D] f32."""
    bl, feat = x1f.shape
    bu = ux1f.shape[0]
    assert x2f.shape == (bl, feat) and ux2f.shape == (bu, feat)
    feat_w, d = w.shape
    assert feat_w == feat
    tk = _pick_tk(feat)
    kt = feat // tk
    n = bl + bu

    flops = 2 * (2 * n) * feat * d + 2 * n * n * d + 10 * n * d
    bytes_accessed = 4 * (2 * n * feat + feat * d) + 3 * 4

    kernel = functools.partial(_spectral_fused_kernel, mu=float(mu))
    return pl.pallas_call(
        kernel,
        out_shape=jax.ShapeDtypeStruct((3,), jnp.float32),
        grid_spec=pltpu.PrefetchScalarGridSpec(
            num_scalar_prefetch=0,
            grid=(kt,),                                   # reduction axis last
            in_specs=[
                pl.BlockSpec((bl, tk), lambda k: (0, k)),  # x1
                pl.BlockSpec((bu, tk), lambda k: (0, k)),  # ux1
                pl.BlockSpec((bl, tk), lambda k: (0, k)),  # x2
                pl.BlockSpec((bu, tk), lambda k: (0, k)),  # ux2
                pl.BlockSpec((tk, d), lambda k: (k, 0)),   # weight slab
            ],
            out_specs=pl.BlockSpec(memory_space=pltpu.MemorySpace.SMEM),
            scratch_shapes=[
                pltpu.VMEM((bl, d), jnp.float32),
                pltpu.VMEM((bu, d), jnp.float32),
                pltpu.VMEM((bl, d), jnp.float32),
                pltpu.VMEM((bu, d), jnp.float32),
            ],
        ),
        compiler_params=pltpu.CompilerParams(
            dimension_semantics=("arbitrary",),
            vmem_limit_bytes=32 * 1024 * 1024,
        ),
        cost_estimate=pl.CostEstimate(
            flops=flops, transcendentals=2 * n, bytes_accessed=bytes_accessed),
    )(x1f, ux1f, x2f, ux2f, w)


# ----------------------------------------------------------------------------
# Spectral.forward == forward_ncd
# ----------------------------------------------------------------------------
@functools.partial(jax.jit, static_argnames=("mu",))
def spectral_forward(params, x1, x2, ux1, ux2, target=None, *, mu=MU):
    def flat(x):
        return x.reshape(x.shape[0], -1)   # free reshape (contiguous), no copy

    out = _spectral_fused(flat(x1), flat(ux1), flat(x2), flat(ux2),
                          params["w"], mu=mu)
    # projector = identity, so the loss is computed directly on the features.
    return {"loss": out[0], "d_dict": {"loss2": out[1], "loss5": out[2]}}


# ----------------------------------------------------------------------------
# Pure-JAX reference (mirrors the PyTorch math; same bf16 MXU quantization
# as the kernel so the comparison isolates kernel correctness).
# ----------------------------------------------------------------------------
def _reference(params, x1, x2, ux1, ux2, mu=MU):
    w = params["w"].astype(jnp.bfloat16)

    def feats(x):
        xf = x.reshape(x.shape[0], -1).astype(jnp.bfloat16)
        return jnp.dot(xf, w, preferred_element_type=jnp.float32)

    z1 = jnp.concatenate([feats(x1), feats(ux1)], axis=0)
    z2 = jnp.concatenate([feats(x2), feats(ux2)], axis=0)
    sqrt_mu = np.sqrt(mu)

    def thresh(z):
        nrm = jnp.linalg.norm(z, axis=1, keepdims=True)
        mask = (nrm < sqrt_mu).astype(jnp.float32)
        return mask * z + (1 - mask) * (z / jnp.maximum(nrm, 1e-12)) * sqrt_mu

    z1, z2 = thresh(z1), thresh(z2)
    n, d = z1.shape
    l1 = -2.0 * jnp.mean(z1 * z2) * d
    sq = (z1 @ z2.T) ** 2
    off = sq - jnp.diag(jnp.diag(sq))
    l2 = jnp.sum(off) / (n * (n - 1))
    return (l1 + l2) / mu, l1 / mu, l2 / mu


if __name__ == "__main__":
    key = jax.random.PRNGKey(0)
    k1, k2, k3, k4, kw = jax.random.split(key, 5)

    B, C, H, W_ = 8, 4, 16, 16          # labeled / unlabeled batch (NCHW)
    x1 = jax.random.normal(k1, (B, C, H, W_), jnp.float32)
    x2 = jax.random.normal(k2, (B, C, H, W_), jnp.float32)
    ux1 = jax.random.normal(k3, (B, C, H, W_), jnp.float32)   # unlabeled batch
    ux2 = jax.random.normal(k4, (B, C, H, W_), jnp.float32)
    target = jnp.zeros((B,), jnp.int32)

    # deterministic backbone stand-in weights: [C*H*W, FEAT_DIM]
    w = 0.02 * jax.random.normal(kw, (C * H * W_, FEAT_DIM), jnp.float32)
    params = {"w": w}

    out = spectral_forward(params, x1, x2, ux1, ux2, target, mu=MU)
    jax.block_until_ready(out["loss"])

    ref_loss, ref_l1, ref_l2 = _reference(params, x1, x2, ux1, ux2, mu=MU)
    np.testing.assert_allclose(np.asarray(out["loss"]), np.asarray(ref_loss),
                               rtol=2e-3, atol=2e-3)
    np.testing.assert_allclose(np.asarray(out["d_dict"]["loss2"]),
                               np.asarray(ref_l1), rtol=2e-3, atol=2e-3)
    np.testing.assert_allclose(np.asarray(out["d_dict"]["loss5"]),
                               np.asarray(ref_l2), rtol=2e-3, atol=2e-3)

    print("KERNEL_OK")
</pallas_src>

<mosaic_0001>
module attributes {stable_mosaic.version = 11 : i64} {
  func.func @_spectral_fused_kernel(%arg0: i32, %arg1: memref<8x512xf32, #tpu.memory_space<vmem>>, %arg2: memref<8x512xf32, #tpu.memory_space<vmem>>, %arg3: memref<8x512xf32, #tpu.memory_space<vmem>>, %arg4: memref<8x512xf32, #tpu.memory_space<vmem>>, %arg5: memref<512x128xf32, #tpu.memory_space<vmem>>, %arg6: memref<3xf32, #tpu.memory_space<smem>>, %arg7: memref<8x128xf32, #tpu.memory_space<vmem>>, %arg8: memref<8x128xf32, #tpu.memory_space<vmem>>, %arg9: memref<8x128xf32, #tpu.memory_space<vmem>>, %arg10: memref<8x128xf32, #tpu.memory_space<vmem>>) attributes {dimension_semantics = [#tpu.dimension_semantics<arbitrary>], iteration_bounds = array<i64: 2>, scalar_prefetch = 0 : i64, scratch_operands = 4 : i64, tpu.core_type = #tpu.core_type<tc>, window_params = [{transform_indices = @transform_0, window_bounds = array<i64: 8, 512>}, {transform_indices = @transform_1, window_bounds = array<i64: 8, 512>}, {transform_indices = @transform_2, window_bounds = array<i64: 8, 512>}, {transform_indices = @transform_3, window_bounds = array<i64: 8, 512>}, {transform_indices = @transform_4, window_bounds = array<i64: 512, 128>}, {transform_indices = @transform_5, window_bounds = array<i64: 3>}]} {
    %c0_i32 = arith.constant 0 : i32
    %0 = arith.cmpi eq, %arg0, %c0_i32 : i32
    %1 = arith.extui %0 : i1 to i32
    %c0_i32_0 = arith.constant 0 : i32
    %2 = arith.cmpi ne, %1, %c0_i32_0 : i32
    scf.if %2 {
      %cst_30 = arith.constant 0.000000e+00 : f32
      %32 = vector.broadcast %cst_30 : f32 to vector<8x128xf32>
      %c0_31 = arith.constant 0 : index
      %c0_32 = arith.constant 0 : index
      %33 = vector.load %arg7[%c0_31, %c0_32] : memref<8x128xf32, #tpu.memory_space<vmem>>, vector<8x128xf32>
      tpu.vector_store %arg7[%c0_31, %c0_32], %32 {strides = array<i32>} : memref<8x128xf32, #tpu.memory_space<vmem>>, vector<8x128xf32>,
      %cst_33 = arith.constant 0.000000e+00 : f32
      %34 = vector.broadcast %cst_33 : f32 to vector<8x128xf32>
      %c0_34 = arith.constant 0 : index
      %c0_35 = arith.constant 0 : index
      %35 = vector.load %arg8[%c0_34, %c0_35] : memref<8x128xf32, #tpu.memory_space<vmem>>, vector<8x128xf32>
      tpu.vector_store %arg8[%c0_34, %c0_35], %34 {strides = array<i32>} : memref<8x128xf32, #tpu.memory_space<vmem>>, vector<8x128xf32>,
      %cst_36 = arith.constant 0.000000e+00 : f32
      %36 = vector.broadcast %cst_36 : f32 to vector<8x128xf32>
      %c0_37 = arith.constant 0 : index
      %c0_38 = arith.constant 0 : index
      %37 = vector.load %arg9[%c0_37, %c0_38] : memref<8x128xf32, #tpu.memory_space<vmem>>, vector<8x128xf32>
      tpu.vector_store %arg9[%c0_37, %c0_38], %36 {strides = array<i32>} : memref<8x128xf32, #tpu.memory_space<vmem>>, vector<8x128xf32>,
      %cst_39 = arith.constant 0.000000e+00 : f32
      %38 = vector.broadcast %cst_39 : f32 to vector<8x128xf32>
      %c0_40 = arith.constant 0 : index
      %c0_41 = arith.constant 0 : index
      %39 = vector.load %arg10[%c0_40, %c0_41] : memref<8x128xf32, #tpu.memory_space<vmem>>, vector<8x128xf32>
      tpu.vector_store %arg10[%c0_40, %c0_41], %38 {strides = array<i32>} : memref<8x128xf32, #tpu.memory_space<vmem>>, vector<8x128xf32>,
    } else {
    }
    %c0 = arith.constant 0 : index
    %c0_1 = arith.constant 0 : index
    %3 = vector.load %arg5[%c0, %c0_1] : memref<512x128xf32, #tpu.memory_space<vmem>>, vector<512x128xf32>
    %4 = arith.truncf %3 : vector<512x128xf32> to vector<512x128xbf16>
    %c0_2 = arith.constant 0 : index
    %c0_3 = arith.constant 0 : index
    %5 = vector.load %arg7[%c0_2, %c0_3] : memref<8x128xf32, #tpu.memory_space<vmem>>, vector<8x128xf32>
    %c0_4 = arith.constant 0 : index
    %c0_5 = arith.constant 0 : index
    %6 = vector.load %arg1[%c0_4, %c0_5] : memref<8x512xf32, #tpu.memory_space<vmem>>, vector<8x512xf32>
    %7 = arith.truncf %6 : vector<8x512xf32> to vector<8x512xbf16>
    %cst = arith.constant dense<0.000000e+00> : vector<8x128xf32>
    %8 = tpu.matmul %7, %4, %cst {dimension_numbers = #tpu.dot_dimension_numbers<[1], [0], [0], [1], [0, 0, 1, 1], [], []>} : vector<8x512xbf16>, vector<512x128xbf16>, vector<8x128xf32> -> vector<8x128xf32>
    %9 = arith.addf %5, %8 : vector<8x128xf32>
    %c0_6 = arith.constant 0 : index
    %c0_7 = arith.constant 0 : index
    %10 = vector.load %arg7[%c0_6, %c0_7] : memref<8x128xf32, #tpu.memory_space<vmem>>, vector<8x128xf32>
    tpu.vector_store %arg7[%c0_6, %c0_7], %9 {strides = array<i32>} : memref<8x128xf32, #tpu.memory_space<vmem>>, vector<8x128xf32>,
    %c0_8 = arith.constant 0 : index
    %c0_9 = arith.constant 0 : index
    %11 = vector.load %arg8[%c0_8, %c0_9] : memref<8x128xf32, #tpu.memory_space<vmem>>, vector<8x128xf32>
    %c0_10 = arith.constant 0 : index
    %c0_11 = arith.constant 0 : index
    %12 = vector.load %arg2[%c0_10, %c0_11] : memref<8x512xf32, #tpu.memory_space<vmem>>, vector<8x512xf32>
    %13 = arith.truncf %12 : vector<8x512xf32> to vector<8x512xbf16>
    %cst_12 = arith.constant dense<0.000000e+00> : vector<8x128xf32>
    %14 = tpu.matmul %13, %4, %cst_12 {dimension_numbers = #tpu.dot_dimension_numbers<[1], [0], [0], [1], [0, 0, 1, 1], [], []>} : vector<8x512xbf16>, vector<512x128xbf16>, vector<8x128xf32> -> vector<8x128xf32>
    %15 = arith.addf %11, %14 : vector<8x128xf32>
    %c0_13 = arith.constant 0 : index
    %c0_14 = arith.constant 0 : index
    %16 = vector.load %arg8[%c0_13, %c0_14] : memref<8x128xf32, #tpu.memory_space<vmem>>, vector<8x128xf32>
    tpu.vector_store %arg8[%c0_13, %c0_14], %15 {strides = array<i32>} : memref<8x128xf32, #tpu.memory_space<vmem>>, vector<8x128xf32>,
    %c0_15 = arith.constant 0 : index
    %c0_16 = arith.constant 0 : index
    %17 = vector.load %arg9[%c0_15, %c0_16] : memref<8x128xf32, #tpu.memory_space<vmem>>, vector<8x128xf32>
    %c0_17 = arith.constant 0 : index
    %c0_18 = arith.constant 0 : index
    %18 = vector.load %arg3[%c0_17, %c0_18] : memref<8x512xf32, #tpu.memory_space<vmem>>, vector<8x512xf32>
    %19 = arith.truncf %18 : vector<8x512xf32> to vector<8x512xbf16>
    %cst_19 = arith.constant dense<0.000000e+00> : vector<8x128xf32>
    %20 = tpu.matmul %19, %4, %cst_19 {dimension_numbers = #tpu.dot_dimension_numbers<[1], [0], [0], [1], [0, 0, 1, 1], [], []>} : vector<8x512xbf16>, vector<512x128xbf16>, vector<8x128xf32> -> vector<8x128xf32>
    %21 = arith.addf %17, %20 : vector<8x128xf32>
    %c0_20 = arith.constant 0 : index
    %c0_21 = arith.constant 0 : index
    %22 = vector.load %arg9[%c0_20, %c0_21] : memref<8x128xf32, #tpu.memory_space<vmem>>, vector<8x128xf32>
    tpu.vector_store %arg9[%c0_20, %c0_21], %21 {strides = array<i32>} : memref<8x128xf32, #tpu.memory_space<vmem>>, vector<8x128xf32>,
    %c0_22 = arith.constant 0 : index
    %c0_23 = arith.constant 0 : index
    %23 = vector.load %arg10[%c0_22, %c0_23] : memref<8x128xf32, #tpu.memory_space<vmem>>, vector<8x128xf32>
    %c0_24 = arith.constant 0 : index
    %c0_25 = arith.constant 0 : index
    %24 = vector.load %arg4[%c0_24, %c0_25] : memref<8x512xf32, #tpu.memory_space<vmem>>, vector<8x512xf32>
    %25 = arith.truncf %24 : vector<8x512xf32> to vector<8x512xbf16>
    %cst_26 = arith.constant dense<0.000000e+00> : vector<8x128xf32>
    %26 = tpu.matmul %25, %4, %cst_26 {dimension_numbers = #tpu.dot_dimension_numbers<[1], [0], [0], [1], [0, 0, 1, 1], [], []>} : vector<8x512xbf16>, vector<512x128xbf16>, vector<8x128xf32> -> vector<8x128xf32>
    %27 = arith.addf %23, %26 : vector<8x128xf32>
    %c0_27 = arith.constant 0 : index
    %c0_28 = arith.constant 0 : index
    %28 = vector.load %arg10[%c0_27, %c0_28] : memref<8x128xf32, #tpu.memory_space<vmem>>, vector<8x128xf32>
    tpu.vector_store %arg10[%c0_27, %c0_28], %27 {strides = array<i32>} : memref<8x128xf32, #tpu.memory_space<vmem>>, vector<8x128xf32>,
    %c1_i32 = arith.constant 1 : i32
    %29 = arith.cmpi eq, %arg0, %c1_i32 : i32
    %30 = arith.extui %29 : i1 to i32
    %c0_i32_29 = arith.constant 0 : i32
    %31 = arith.cmpi ne, %30, %c0_i32_29 : i32
    scf.if %31 {
      %c0_30 = arith.constant 0 : index
      %c0_31 = arith.constant 0 : index
      %32 = vector.load %arg7[%c0_30, %c0_31] : memref<8x128xf32, #tpu.memory_space<vmem>>, vector<8x128xf32>
      %33 = arith.mulf %32, %32 : vector<8x128xf32>
      %cst_32 = arith.constant dense<0.000000e+00> : vector<8xf32>
      %34 = vector.multi_reduction <add>, %33, %cst_32 [1] : vector<8x128xf32> to vector<8xf32>
      %35 = vector.shape_cast %34 : vector<8xf32> to vector<8x1xf32>
      %cst_33 = arith.constant 1.000000e+00 : f32
      %36 = vector.broadcast %cst_33 : f32 to vector<8x1xf32>
      %37 = arith.cmpf olt, %35, %36 : vector<8x1xf32>
      %cst_34 = arith.constant 1.000000e-24 : f32
      %38 = vector.broadcast %cst_34 : f32 to vector<8x1xf32>
      %39 = arith.maximumf %35, %38 : vector<8x1xf32>
      %40 = math.rsqrt %39 : vector<8x1xf32>
      %cst_35 = arith.constant 1.000000e+00 : f32
      %41 = vector.broadcast %cst_35 : f32 to vector<8x1xf32>
      %42 = arith.mulf %41, %40 : vector<8x1xf32>
      %cst_36 = arith.constant 1.000000e+00 : f32
      %43 = vector.broadcast %cst_36 : f32 to vector<8x1xf32>
      %44 = arith.select %37, %43, %42 : vector<8x1xi1>, vector<8x1xf32>
      %45 = vector.broadcast %44 : vector<8x1xf32> to vector<8x128xf32>
      %46 = arith.mulf %32, %45 : vector<8x128xf32>
      %c0_37 = arith.constant 0 : index
      %c0_38 = arith.constant 0 : index
      %47 = vector.load %arg8[%c0_37, %c0_38] : memref<8x128xf32, #tpu.memory_space<vmem>>, vector<8x128xf32>
      %48 = arith.mulf %47, %47 : vector<8x128xf32>
      %cst_39 = arith.constant dense<0.000000e+00> : vector<8xf32>
      %49 = vector.multi_reduction <add>, %48, %cst_39 [1] : vector<8x128xf32> to vector<8xf32>
      %50 = vector.shape_cast %49 : vector<8xf32> to vector<8x1xf32>
      %cst_40 = arith.constant 1.000000e+00 : f32
      %51 = vector.broadcast %cst_40 : f32 to vector<8x1xf32>
      %52 = arith.cmpf olt, %50, %51 : vector<8x1xf32>
      %cst_41 = arith.constant 1.000000e-24 : f32
      %53 = vector.broadcast %cst_41 : f32 to vector<8x1xf32>
      %54 = arith.maximumf %50, %53 : vector<8x1xf32>
      %55 = math.rsqrt %54 : vector<8x1xf32>
      %cst_42 = arith.constant 1.000000e+00 : f32
      %56 = vector.broadcast %cst_42 : f32 to vector<8x1xf32>
      %57 = arith.mulf %56, %55 : vector<8x1xf32>
      %cst_43 = arith.constant 1.000000e+00 : f32
      %58 = vector.broadcast %cst_43 : f32 to vector<8x1xf32>
      %59 = arith.select %52, %58, %57 : vector<8x1xi1>, vector<8x1xf32>
      %60 = vector.broadcast %59 : vector<8x1xf32> to vector<8x128xf32>
      %61 = arith.mulf %47, %60 : vector<8x128xf32>
      %c0_44 = arith.constant 0 : index
      %c0_45 = arith.constant 0 : index
      %62 = vector.load %arg9[%c0_44, %c0_45] : memref<8x128xf32, #tpu.memory_space<vmem>>, vector<8x128xf32>
      %63 = arith.mulf %62, %62 : vector<8x128xf32>
      %cst_46 = arith.constant dense<0.000000e+00> : vector<8xf32>
      %64 = vector.multi_reduction <add>, %63, %cst_46 [1] : vector<8x128xf32> to vector<8xf32>
      %65 = vector.shape_cast %64 : vector<8xf32> to vector<8x1xf32>
      %cst_47 = arith.constant 1.000000e+00 : f32
      %66 = vector.broadcast %cst_47 : f32 to vector<8x1xf32>
      %67 = arith.cmpf olt, %65, %66 : vector<8x1xf32>
      %cst_48 = arith.constant 1.000000e-24 : f32
      %68 = vector.broadcast %cst_48 : f32 to vector<8x1xf32>
      %69 = arith.maximumf %65, %68 : vector<8x1xf32>
      %70 = math.rsqrt %69 : vector<8x1xf32>
      %cst_49 = arith.constant 1.000000e+00 : f32
      %71 = vector.broadcast %cst_49 : f32 to vector<8x1xf32>
      %72 = arith.mulf %71, %70 : vector<8x1xf32>
      %cst_50 = arith.constant 1.000000e+00 : f32
      %73 = vector.broadcast %cst_50 : f32 to vector<8x1xf32>
      %74 = arith.select %67, %73, %72 : vector<8x1xi1>, vector<8x1xf32>
      %75 = vector.broadcast %74 : vector<8x1xf32> to vector<8x128xf32>
      %76 = arith.mulf %62, %75 : vector<8x128xf32>
      %c0_51 = arith.constant 0 : index
      %c0_52 = arith.constant 0 : index
      %77 = vector.load %arg10[%c0_51, %c0_52] : memref<8x128xf32, #tpu.memory_space<vmem>>, vector<8x128xf32>
      %78 = arith.mulf %77, %77 : vector<8x128xf32>
      %cst_53 = arith.constant dense<0.000000e+00> : vector<8xf32>
      %79 = vector.multi_reduction <add>, %78, %cst_53 [1] : vector<8x128xf32> to vector<8xf32>
      %80 = vector.shape_cast %79 : vector<8xf32> to vector<8x1xf32>
      %cst_54 = arith.constant 1.000000e+00 : f32
      %81 = vector.broadcast %cst_54 : f32 to vector<8x1xf32>
      %82 = arith.cmpf olt, %80, %81 : vector<8x1xf32>
      %cst_55 = arith.constant 1.000000e-24 : f32
      %83 = vector.broadcast %cst_55 : f32 to vector<8x1xf32>
      %84 = arith.maximumf %80, %83 : vector<8x1xf32>
      %85 = math.rsqrt %84 : vector<8x1xf32>
      %cst_56 = arith.constant 1.000000e+00 : f32
      %86 = vector.broadcast %cst_56 : f32 to vector<8x1xf32>
      %87 = arith.mulf %86, %85 : vector<8x1xf32>
      %cst_57 = arith.constant 1.000000e+00 : f32
      %88 = vector.broadcast %cst_57 : f32 to vector<8x1xf32>
      %89 = arith.select %82, %88, %87 : vector<8x1xi1>, vector<8x1xf32>
      %90 = vector.broadcast %89 : vector<8x1xf32> to vector<8x128xf32>
      %91 = arith.mulf %77, %90 : vector<8x128xf32>
      %92 = arith.mulf %46, %76 : vector<8x128xf32>
      %93 = arith.mulf %61, %91 : vector<8x128xf32>
      %cst_58 = arith.constant dense<0.000000e+00> : vector<8xf32>
      %94 = vector.multi_reduction <add>, %92, %cst_58 [1] : vector<8x128xf32> to vector<8xf32>
      %95 = vector.shape_cast %94 : vector<8xf32> to vector<8x1xf32>
      %cst_59 = arith.constant dense<0.000000e+00> : vector<8xf32>
      %96 = vector.multi_reduction <add>, %93, %cst_59 [1] : vector<8x128xf32> to vector<8xf32>
      %97 = vector.shape_cast %96 : vector<8xf32> to vector<8x1xf32>
      %98 = vector.shape_cast %92 : vector<8x128xf32> to vector<1x8x128xf32>
      %cst_60 = arith.constant dense<0.000000e+00> : vector<1xf32>
      %99 = vector.multi_reduction <add>, %98, %cst_60 [1, 2] : vector<1x8x128xf32> to vector<1xf32>
      %100 = vector.shape_cast %99 : vector<1xf32> to vector<1x1x1xf32>
      %101 = vector.extract %100[0, 0, 0] : f32 from vector<1x1x1xf32>
      %102 = vector.shape_cast %93 : vector<8x128xf32> to vector<1x8x128xf32>
      %cst_61 = arith.constant dense<0.000000e+00> : vector<1xf32>
      %103 = vector.multi_reduction <add>, %102, %cst_61 [1, 2] : vector<1x8x128xf32> to vector<1xf32>
      %104 = vector.shape_cast %103 : vector<1xf32> to vector<1x1x1xf32>
      %105 = vector.extract %104[0, 0, 0] : f32 from vector<1x1x1xf32>
      %106 = arith.addf %101, %105 : f32
      %cst_62 = arith.constant -2.000000e+00 : f32
      %107 = arith.mulf %cst_62, %106 : f32
      %cst_63 = arith.constant 1.600000e+01 : f32
      %108 = arith.divf %107, %cst_63 : f32
      %cst_64 = arith.constant dense<0.000000e+00> : vector<8x8xf32>
      %109 = tpu.matmul %46, %76, %cst_64 {dimension_numbers = #tpu.dot_dimension_numbers<[1], [1], [0], [0], [0, 0, 1, 0], [], []>} : vector<8x128xf32>, vector<8x128xf32>, vector<8x8xf32> -> vector<8x8xf32>
      %110 = arith.mulf %109, %109 : vector<8x8xf32>
      %111 = vector.shape_cast %110 : vector<8x8xf32> to vector<1x8x8xf32>
      %cst_65 = arith.constant dense<0.000000e+00> : vector<1xf32>
      %112 = vector.multi_reduction <add>, %111, %cst_65 [1, 2] : vector<1x8x8xf32> to vector<1xf32>
      %113 = vector.shape_cast %112 : vector<1xf32> to vector<1x1x1xf32>
      %114 = vector.extract %113[0, 0, 0] : f32 from vector<1x1x1xf32>
      %cst_66 = arith.constant dense<0.000000e+00> : vector<8x8xf32>
      %115 = tpu.matmul %46, %91, %cst_66 {dimension_numbers = #tpu.dot_dimension_numbers<[1], [1], [0], [0], [0, 0, 1, 0], [], []>} : vector<8x128xf32>, vector<8x128xf32>, vector<8x8xf32> -> vector<8x8xf32>
      %116 = arith.mulf %115, %115 : vector<8x8xf32>
      %117 = vector.shape_cast %116 : vector<8x8xf32> to vector<1x8x8xf32>
      %cst_67 = arith.constant dense<0.000000e+00> : vector<1xf32>
      %118 = vector.multi_reduction <add>, %117, %cst_67 [1, 2] : vector<1x8x8xf32> to vector<1xf32>
      %119 = vector.shape_cast %118 : vector<1xf32> to vector<1x1x1xf32>
      %120 = vector.extract %119[0, 0, 0] : f32 from vector<1x1x1xf32>
      %121 = arith.addf %114, %120 : f32
      %cst_68 = arith.constant dense<0.000000e+00> : vector<8x8xf32>
      %122 = tpu.matmul %61, %76, %cst_68 {dimension_numbers = #tpu.dot_dimension_numbers<[1], [1], [0], [0], [0, 0, 1, 0], [], []>} : vector<8x128xf32>, vector<8x128xf32>, vector<8x8xf32> -> vector<8x8xf32>
      %123 = arith.mulf %122, %122 : vector<8x8xf32>
      %124 = vector.shape_cast %123 : vector<8x8xf32> to vector<1x8x8xf32>
      %cst_69 = arith.constant dense<0.000000e+00> : vector<1xf32>
      %125 = vector.multi_reduction <add>, %124, %cst_69 [1, 2] : vector<1x8x8xf32> to vector<1xf32>
      %126 = vector.shape_cast %125 : vector<1xf32> to vector<1x1x1xf32>
      %127 = vector.extract %126[0, 0, 0] : f32 from vector<1x1x1xf32>
      %128 = arith.addf %121, %127 : f32
      %cst_70 = arith.constant dense<0.000000e+00> : vector<8x8xf32>
      %129 = tpu.matmul %61, %91, %cst_70 {dimension_numbers = #tpu.dot_dimension_numbers<[1], [1], [0], [0], [0, 0, 1, 0], [], []>} : vector<8x128xf32>, vector<8x128xf32>, vector<8x8xf32> -> vector<8x8xf32>
      %130 = arith.mulf %129, %129 : vector<8x8xf32>
      %131 = vector.shape_cast %130 : vector<8x8xf32> to vector<1x8x8xf32>
      %cst_71 = arith.constant dense<0.000000e+00> : vector<1xf32>
      %132 = vector.multi_reduction <add>, %131, %cst_71 [1, 2] : vector<1x8x8xf32> to vector<1xf32>
      %133 = vector.shape_cast %132 : vector<1xf32> to vector<1x1x1xf32>
      %134 = vector.extract %133[0, 0, 0] : f32 from vector<1x1x1xf32>
      %135 = arith.addf %128, %134 : f32
      %136 = arith.mulf %95, %95 : vector<8x1xf32>
      %137 = vector.shape_cast %136 : vector<8x1xf32> to vector<1x8x1xf32>
      %cst_72 = arith.constant dense<0.000000e+00> : vector<1xf32>
      %138 = vector.multi_reduction <add>, %137, %cst_72 [1, 2] : vector<1x8x1xf32> to vector<1xf32>
      %139 = vector.shape_cast %138 : vector<1xf32> to vector<1x1x1xf32>
      %140 = vector.extract %139[0, 0, 0] : f32 from vector<1x1x1xf32>
      %141 = arith.mulf %97, %97 : vector<8x1xf32>
      %142 = vector.shape_cast %141 : vector<8x1xf32> to vector<1x8x1xf32>
      %cst_73 = arith.constant dense<0.000000e+00> : vector<1xf32>
      %143 = vector.multi_reduction <add>, %142, %cst_73 [1, 2] : vector<1x8x1xf32> to vector<1xf32>
      %144 = vector.shape_cast %143 : vector<1xf32> to vector<1x1x1xf32>
      %145 = vector.extract %144[0, 0, 0] : f32 from vector<1x1x1xf32>
      %146 = arith.addf %140, %145 : f32
      %147 = arith.subf %135, %146 : f32
      %cst_74 = arith.constant 2.400000e+02 : f32
      %148 = arith.divf %147, %cst_74 : f32
      %149 = arith.addf %108, %148 : f32
      %cst_75 = arith.constant 1.000000e+00 : f32
      %150 = arith.mulf %149, %cst_75 : f32
      %c0_76 = arith.constant 0 : index
      %151 = memref.load %arg6[%c0_76] : memref<3xf32, #tpu.memory_space<smem>>
      memref.store %150, %arg6[%c0_76] : memref<3xf32, #tpu.memory_space<smem>>
      %cst_77 = arith.constant 1.000000e+00 : f32
      %152 = arith.mulf %108, %cst_77 : f32
      %c1 = arith.constant 1 : index
      %153 = memref.load %arg6[%c1] : memref<3xf32, #tpu.memory_space<smem>>
      memref.store %152, %arg6[%c1] : memref<3xf32, #tpu.memory_space<smem>>
      %cst_78 = arith.constant 1.000000e+00 : f32
      %154 = arith.mulf %148, %cst_78 : f32
      %c2 = arith.constant 2 : index
      %155 = memref.load %arg6[%c2] : memref<3xf32, #tpu.memory_space<smem>>
      memref.store %154, %arg6[%c2] : memref<3xf32, #tpu.memory_space<smem>>
    } else {
    }
    return
  }
  func.func @transform_0(%arg0: i32) -> (i32, i32) {
    %c0_i32 = arith.constant 0 : i32
    %c0_i32_0 = arith.constant 0 : i32
    return %c0_i32, %arg0 : i32, i32
  }
  func.func @transform_1(%arg0: i32) -> (i32, i32) {
    %c0_i32 = arith.constant 0 : i32
    %c0_i32_0 = arith.constant 0 : i32
    return %c0_i32, %arg0 : i32, i32
  }
  func.func @transform_2(%arg0: i32) -> (i32, i32) {
    %c0_i32 = arith.constant 0 : i32
    %c0_i32_0 = arith.constant 0 : i32
    return %c0_i32, %arg0 : i32, i32
  }
  func.func @transform_3(%arg0: i32) -> (i32, i32) {
    %c0_i32 = arith.constant 0 : i32
    %c0_i32_0 = arith.constant 0 : i32
    return %c0_i32, %arg0 : i32, i32
  }
  func.func @transform_4(%arg0: i32) -> (i32, i32) {
    %c0_i32 = arith.constant 0 : i32
    %c0_i32_0 = arith.constant 0 : i32
    return %arg0, %c0_i32 : i32, i32
  }
  func.func @transform_5(%arg0: i32) -> i32 {
    %c0_i32 = arith.constant 0 : i32
    %c0_i32_0 = arith.constant 0 : i32
    return %c0_i32 : i32
  }
}

</mosaic_0001>

<llo_original>
// kernel: spectral_forward.1
$region0: #{spectral_forward.1}
  #allocation0 [shape = 'u32[]', space=smem, size = 0x4, offset = 0x4, fixed_abs, tag = 'smem constant byte address 0x4 - core index']
  #allocation1 [shape = 'u32[144,128]{1,0:T(1,128)}', space=vmem, size = 0x12000, scoped, tag = 'internal scratch']
  #allocation2 [shape = 'f32[8,128]{1,0:T(8,128)}', space=vmem, size = 0x1000, scoped, tag = 'scratch operand']
  #allocation3 [shape = 'f32[8,128]{1,0:T(8,128)}', space=vmem, size = 0x1000, scoped, tag = 'scratch operand']
  #allocation4 [shape = 'f32[8,128]{1,0:T(8,128)}', space=vmem, size = 0x1000, scoped, tag = 'scratch operand']
  #allocation5 [shape = 'f32[8,128]{1,0:T(8,128)}', space=vmem, size = 0x1000, scoped, tag = 'scratch operand']
  %s0 = inlined_call_operand.vmem [shape: f32[8,1024], index: 0, kind: input, shape index: {}]
  %s1 = inlined_call_operand.vmem [shape: f32[8,1024], index: 1, kind: input, shape index: {}]
  %s2 = inlined_call_operand.vmem [shape: f32[8,1024], index: 2, kind: input, shape index: {}]
  %s3 = inlined_call_operand.vmem [shape: f32[8,1024], index: 3, kind: input, shape index: {}]
  %s4 = inlined_call_operand.vmem [shape: f32[1024,128], index: 4, kind: input, shape index: {}]
  %s5 = inlined_call_operand.vmem [shape: f32[3], index: 5, kind: output, shape index: {}]
  %s6 = sld [smem:[#allocation0]]
  $region61: #{spectral_forward.1} parent=0
    _
  %s8 = ssub.s32 1, %s6
  %s9 = scalar_select 0, %s8, %s6
  $region1: #{spectral_forward.1} parent=0
    #allocation6 [shape = 'u8[512]{0}', space=smem, size = 0x200, scoped, tag = 'output window, operand 0, single buffered']
    #allocation7 [shape = 's32[2]{0}', space=sflag, size = 0x8, scoped, tag = 'scoped memory for spectral_forward.1']
    %10 = vsyncpa [#allocation7], 0
    loop: start=0, step=1, limit=4
    $region2: #{spectral_forward.1} parent=1 // loop_pre_header
      _
    $region3: #{spectral_forward.1} parent=1 // loop_header
      %s12 = sphi 0, %s16
      %p13 = scmp.ge.s32.totalorder %s12, 4
      %s22 = sphi 0, %s24
      %s25 = sphi 0, %s22
      %s26 = sphi 0, %s25
      %s42 = sphi 0, %s26
      %s48 = sphi 0, %s50
      %s51 = sphi 0, %s48
      %s52 = sphi 0, %s51
      %s68 = sphi 0, %s52
      %s74 = sphi 0, %s76
      %s77 = sphi 0, %s74
      %s78 = sphi 0, %s77
      %s94 = sphi 0, %s78
      %s100 = sphi 0, %s102
      %s103 = sphi 0, %s100
      %s104 = sphi 0, %s103
      %s120 = sphi 0, %s104
      %s126 = sphi 0, %s128
      %s129 = sphi 0, %s126
      %s130 = sphi 0, %s129
      %s146 = sphi 0, %s130
      %s150 = sphi 0, %s150
      %s152 = sphi 0, %s150
      %s153 = sphi 0, %s152
      %s167 = sphi 0, %s153
    $region4: #{spectral_forward.1} parent=1 // loop_header_branch
      %15 = sbr.rel (%p13) target = $region8
    $region5: #{spectral_forward.1} parent=1 // loop_body
      %s17 = ssub.s32 %s12, 1
      %s18 = ssub.s32 %s12, 2
      %s19 = sadd.s32 %s12, 1
      %s20 = ssub.s32 %s12, %s19
      %p21 = scmp.eq.s32.totalorder %s20, 0
      %s23 = sadd.s32 %s22, 1
      %s24 = scalar_select %p21, %s22, %s23
      %p27 = pneg %p21
      %p28 = scmp.eq.s32.totalorder %s12, 1
      %p29 = por %p27, %p28
      %p30 = scmp.ne.s32.totalorder %s22, %s25
      %p31 = scmp.eq.s32.totalorder %s12, 0
      %p32 = por %p30, %p31
      %p33 = scmp.ne.s32.totalorder %s22, %s25
      %p34 = scmp.eq.s32.totalorder %s17, 1
      %p35 = por %p33, %p34
      %p36 = scmp.ne.s32.totalorder %s25, %s26
      %p37 = scmp.eq.s32.totalorder %s17, 0
      %p38 = por %p36, %p37
      %p39 = scmp.ne.s32.totalorder %s25, %s26
      %p40 = scmp.eq.s32.totalorder %s18, 1
      %p41 = por %p39, %p40
      %p43 = scmp.ne.s32.totalorder %s26, %s42
      %p44 = scmp.eq.s32.totalorder %s18, 0
      %p45 = por %p43, %p44
      %s46 = ssub.s32 %s12, %s19
      %p47 = scmp.eq.s32.totalorder %s46, 0
      %s49 = sadd.s32 %s48, 1
      %s50 = scalar_select %p47, %s48, %s49
      %p53 = pneg %p47
      %p54 = scmp.eq.s32.totalorder %s12, 1
      %p55 = por %p53, %p54
      %p56 = scmp.ne.s32.totalorder %s48, %s51
      %p57 = scmp.eq.s32.totalorder %s12, 0
      %p58 = por %p56, %p57
      %p59 = scmp.ne.s32.totalorder %s48, %s51
      %p60 = scmp.eq.s32.totalorder %s17, 1
      %p61 = por %p59, %p60
      %p62 = scmp.ne.s32.totalorder %s51, %s52
      %p63 = scmp.eq.s32.totalorder %s17, 0
      %p64 = por %p62, %p63
      %p65 = scmp.ne.s32.totalorder %s51, %s52
      %p66 = scmp.eq.s32.totalorder %s18, 1
      %p67 = por %p65, %p66
      %p69 = scmp.ne.s32.totalorder %s52, %s68
      %p70 = scmp.eq.s32.totalorder %s18, 0
      %p71 = por %p69, %p70
      %s72 = ssub.s32 %s12, %s19
      %p73 = scmp.eq.s32.totalorder %s72, 0
      %s75 = sadd.s32 %s74, 1
      %s76 = scalar_select %p73, %s74, %s75
      %p79 = pneg %p73
      %p80 = scmp.eq.s32.totalorder %s12, 1
      %p81 = por %p79, %p80
      %p82 = scmp.ne.s32.totalorder %s74, %s77
      %p83 = scmp.eq.s32.totalorder %s12, 0
      %p84 = por %p82, %p83
      %p85 = scmp.ne.s32.totalorder %s74, %s77
      %p86 = scmp.eq.s32.totalorder %s17, 1
      %p87 = por %p85, %p86
      %p88 = scmp.ne.s32.totalorder %s77, %s78
      %p89 = scmp.eq.s32.totalorder %s17, 0
      %p90 = por %p88, %p89
      %p91 = scmp.ne.s32.totalorder %s77, %s78
      %p92 = scmp.eq.s32.totalorder %s18, 1
      %p93 = por %p91, %p92
      %p95 = scmp.ne.s32.totalorder %s78, %s94
      %p96 = scmp.eq.s32.totalorder %s18, 0
      %p97 = por %p95, %p96
      %s98 = ssub.s32 %s12, %s19
      %p99 = scmp.eq.s32.totalorder %s98, 0
      %s101 = sadd.s32 %s100, 1
      %s102 = scalar_select %p99, %s100, %s101
      %p105 = pneg %p99
      %p106 = scmp.eq.s32.totalorder %s12, 1
      %p107 = por %p105, %p106
      %p108 = scmp.ne.s32.totalorder %s100, %s103
      %p109 = scmp.eq.s32.totalorder %s12, 0
      %p110 = por %p108, %p109
      %p111 = scmp.ne.s32.totalorder %s100, %s103
      %p112 = scmp.eq.s32.totalorder %s17, 1
      %p113 = por %p111, %p112
      %p114 = scmp.ne.s32.totalorder %s103, %s104
      %p115 = scmp.eq.s32.totalorder %s17, 0
      %p116 = por %p114, %p115
      %p117 = scmp.ne.s32.totalorder %s103, %s104
      %p118 = scmp.eq.s32.totalorder %s18, 1
      %p119 = por %p117, %p118
      %p121 = scmp.ne.s32.totalorder %s104, %s120
      %p122 = scmp.eq.s32.totalorder %s18, 0
      %p123 = por %p121, %p122
      %s124 = ssub.s32 %s12, %s19
      %p125 = scmp.eq.s32.totalorder %s124, 0
      %s127 = sadd.s32 %s126, 1
      %s128 = scalar_select %p125, %s126, %s127
      %p131 = pneg %p125
      %p132 = scmp.eq.s32.totalorder %s12, 1
      %p133 = por %p131, %p132
      %p134 = scmp.ne.s32.totalorder %s126, %s129
      %p135 = scmp.eq.s32.totalorder %s12, 0
      %p136 = por %p134, %p135
      %p137 = scmp.ne.s32.totalorder %s126, %s129
      %p138 = scmp.eq.s32.totalorder %s17, 1
      %p139 = por %p137, %p138
      %p140 = scmp.ne.s32.totalorder %s129, %s130
      %p141 = scmp.eq.s32.totalorder %s17, 0
      %p142 = por %p140, %p141
      %p143 = scmp.ne.s32.totalorder %s129, %s130
      %p144 = scmp.eq.s32.totalorder %s18, 1
      %p145 = por %p143, %p144
      %p147 = scmp.ne.s32.totalorder %s130, %s146
      %p148 = scmp.eq.s32.totalorder %s18, 0
      %p149 = por %p147, %p148
      %s151 = sadd.s32 %s150, 1
      %p154 = scmp.eq.s32.totalorder %s12, 1
      %p155 = scmp.ne.s32.totalorder %s150, %s152
      %p156 = scmp.eq.s32.totalorder %s12, 0
      %p157 = por %p155, %p156
      %p158 = scmp.ne.s32.totalorder %s150, %s152
      %p159 = scmp.eq.s32.totalorder %s17, 1
      %p160 = por %p158, %p159
      %p161 = scmp.ne.s32.totalorder %s152, %s153
      %p162 = scmp.eq.s32.totalorder %s17, 0
      %p163 = por %p161, %p162
      %p164 = scmp.ne.s32.totalorder %s152, %s153
      %p165 = scmp.eq.s32.totalorder %s18, 1
      %p166 = por %p164, %p165
      %p168 = scmp.ne.s32.totalorder %s153, %s167
      %p169 = scmp.eq.s32.totalorder %s18, 0
      %p170 = por %p168, %p169
      %p171 = scmp.le.s32.totalorder 1, %s12
      %p172 = scmp.lt.s32.totalorder %s12, 3
      %p173 = pnand %p171, %p172
      %p174 = pneg %p173
      // Predicated region
      $region9: #{spectral_forward.1} parent=5 // pred_check
        _
      $region10: #{spectral_forward.1} parent=5 // pred_check_branch
        %176 = sbr.rel (%p173) target = $region12
      $region11: #{spectral_forward.1} parent=5 // pred_region
        %s177 = ssub.s32 %s12, 1
      $region12: #{spectral_forward.1} parent=5 // pred_fallthru
        _
      %p178 = scmp.lt.s32.totalorder %s12, 2
      // Predicated region
      $region13: #{spectral_forward.1} parent=5 // pred_check
        %p179 = pneg %p178
      $region14: #{spectral_forward.1} parent=5 // pred_check_branch
        %181 = sbr.rel (%p179) target = $region16
      $region15: #{spectral_forward.1} parent=5 // pred_region
        // Predicated region
        $region17: #{spectral_forward.1} parent=15 // pred_check
          %p182 = pneg %p32
        $region18: #{spectral_forward.1} parent=15 // pred_check_branch
          %184 = sbr.rel (%p182) target = $region20
        $region19: #{spectral_forward.1} parent=15 // pred_region
          %s185 = smul.u32 4, %s12
          %p186 = scmp.lt.s32.totalorder %s185, 7
          %s187 = scalar_select %p186, %s185, 7
          %s188 = smul.addr %s187, 8
          %s189 = scalar_lea.vmem %s0, %s188
          %s190 = smul.u32 4, %s12
        $region20: #{spectral_forward.1} parent=15 // pred_fallthru
          _
        // Predicated region
        $region21: #{spectral_forward.1} parent=15 // pred_check
          %p191 = pneg %p58
        $region22: #{spectral_forward.1} parent=15 // pred_check_branch
          %193 = sbr.rel (%p191) target = $region24
        $region23: #{spectral_forward.1} parent=15 // pred_region
          %s194 = smul.u32 4, %s12
          %p195 = scmp.lt.s32.totalorder %s194, 7
          %s196 = scalar_select %p195, %s194, 7
          %s197 = smul.addr %s196, 8
          %s198 = scalar_lea.vmem %s1, %s197
          %s199 = smul.u32 4, %s12
        $region24: #{spectral_forward.1} parent=15 // pred_fallthru
          _
        // Predicated region
        $region25: #{spectral_forward.1} parent=15 // pred_check
          %p200 = pneg %p84
        $region26: #{spectral_forward.1} parent=15 // pred_check_branch
          %202 = sbr.rel (%p200) target = $region28
        $region27: #{spectral_forward.1} parent=15 // pred_region
          %s203 = smul.u32 4, %s12
          %p204 = scmp.lt.s32.totalorder %s203, 7
          %s205 = scalar_select %p204, %s203, 7
          %s206 = smul.addr %s205, 8
          %s207 = scalar_lea.vmem %s2, %s206
          %s208 = smul.u32 4, %s12
        $region28: #{spectral_forward.1} parent=15 // pred_fallthru
          _
        // Predicated region
        $region29: #{spectral_forward.1} parent=15 // pred_check
          %p209 = pneg %p110
        $region30: #{spectral_forward.1} parent=15 // pred_check_branch
          %211 = sbr.rel (%p209) target = $region32
        $region31: #{spectral_forward.1} parent=15 // pred_region
          %s212 = smul.u32 4, %s12
          %p213 = scmp.lt.s32.totalorder %s212, 7
          %s214 = scalar_select %p213, %s212, 7
          %s215 = smul.addr %s214, 8
          %s216 = scalar_lea.vmem %s3, %s215
          %s217 = smul.u32 4, %s12
        $region32: #{spectral_forward.1} parent=15 // pred_fallthru
          _
        // Predicated region
        $region33: #{spectral_forward.1} parent=15 // pred_check
          %p218 = pneg %p136
        $region34: #{spectral_forward.1} parent=15 // pred_check_branch
          %220 = sbr.rel (%p218) target = $region36
        $region35: #{spectral_forward.1} parent=15 // pred_region
          %s221 = smul.u32 64, %s12
          %p222 = scmp.lt.s32.totalorder %s221, 127
          %s223 = scalar_select %p222, %s221, 127
          %s224 = smul.addr %s223, 8
          %s225 = scalar_lea.vmem %s4, %s224
          %s226 = smul.u32 64, %s12
        $region36: #{spectral_forward.1} parent=15 // pred_fallthru
          _
      $region16: #{spectral_forward.1} parent=5 // pred_fallthru
        _
      %p227 = scmp.le.s32.totalorder 1, %s12
      %p228 = scmp.lt.s32.totalorder %s12, 3
      %p229 = pnand %p227, %p228
      %p230 = pneg %p229
      // Predicated region
      $region37: #{spectral_forward.1} parent=5 // pred_check
        _
      $region38: #{spectral_forward.1} parent=5 // pred_check_branch
        %232 = sbr.rel (%p229) target = $region40
      $region39: #{spectral_forward.1} parent=5 // pred_region
        %s233 = ssub.s32 %s12, 1
        %s234 = smul.u32 4, %s17
        %p235 = scmp.lt.s32.totalorder %s234, 7
        %s236 = scalar_select %p235, %s234, 7
        %s237 = smul.addr %s236, 8
        %s238 = scalar_lea.vmem %s0, %s237
        %p239 = pneg %p38
        %p240 = pneg %p35
        %s241 = smul.u32 4, %s17
        %p242 = scmp.lt.s32.totalorder %s241, 7
        %s243 = scalar_select %p242, %s241, 7
        %s244 = smul.addr %s243, 8
        %s245 = scalar_lea.vmem %s1, %s244
        %p246 = pneg %p64
        %p247 = pneg %p61
        %s248 = smul.u32 4, %s17
        %p249 = scmp.lt.s32.totalorder %s248, 7
        %s250 = scalar_select %p249, %s248, 7
        %s251 = smul.addr %s250, 8
        %s252 = scalar_lea.vmem %s2, %s251
        %p253 = pneg %p90
        %p254 = pneg %p87
        %s255 = smul.u32 4, %s17
        %p256 = scmp.lt.s32.totalorder %s255, 7
        %s257 = scalar_select %p256, %s255, 7
        %s258 = smul.addr %s257, 8
        %s259 = scalar_lea.vmem %s3, %s258
        %p260 = pneg %p116
        %p261 = pneg %p113
        %s262 = smul.u32 64, %s17
        %p263 = scmp.lt.s32.totalorder %s262, 127
        %s264 = scalar_select %p263, %s262, 127
        %s265 = smul.addr %s264, 8
        %s266 = scalar_lea.vmem %s4, %s265
        %p267 = pneg %p142
        %p268 = pneg %p139
        %p269 = pneg %p163
        %p270 = pneg %p160
        %s271 = smul.u32 4, %s17
        %p272 = scmp.lt.s32.totalorder %s271, 7
        %s273 = scalar_select %p272, %s271, 7
        %s274 = smul.addr %s273, 8
        %s275 = scalar_lea.vmem %s0, %s274
        %s276 = smul.u32 4, %s17
        %s277 = smul.u32 4, %s17
        %p278 = scmp.lt.s32.totalorder %s277, 7
        %s279 = scalar_select %p278, %s277, 7
        %s280 = smul.addr %s279, 8
        %s281 = scalar_lea.vmem %s1, %s280
        %s282 = smul.u32 4, %s17
        %s283 = smul.u32 4, %s17
        %p284 = scmp.lt.s32.totalorder %s283, 7
        %s285 = scalar_select %p284, %s283, 7
        %s286 = smul.addr %s285, 8
        %s287 = scalar_lea.vmem %s2, %s286
        %s288 = smul.u32 4, %s17
        %s289 = smul.u32 4, %s17
        %p290 = scmp.lt.s32.totalorder %s289, 7
        %s291 = scalar_select %p290, %s289, 7
        %s292 = smul.addr %s291, 8
        %s293 = scalar_lea.vmem %s3, %s292
        %s294 = smul.u32 4, %s17
        %s295 = smul.u32 64, %s17
        %p296 = scmp.lt.s32.totalorder %s295, 127
        %s297 = scalar_select %p296, %s295, 127
        %s298 = smul.addr %s297, 8
        %s299 = scalar_lea.vmem %s4, %s298
        %s300 = smul.u32 64, %s17
        %p302 = scmp.eq.s32.totalorder %s17, 0
        // Predicated region
        $region41: #{spectral_forward.1} parent=39 // pred_check
          %p303 = pneg %p302
        $region42: #{spectral_forward.1} parent=39 // pred_check_branch
          %305 = sbr.rel (%p303) target = $region44
        $region43: #{spectral_forward.1} parent=39 // pred_region
          %306 = vst [vmem:[#allocation2] sm:$0xff] 0.0
          %307 = vst [vmem:[#allocation3] sm:$0xff] 0.0
          %308 = vst [vmem:[#allocation4] sm:$0xff] 0.0
          %309 = vst [vmem:[#allocation5] sm:$0xff] 0.0
        $region44: #{spectral_forward.1} parent=39 // pred_fallthru
          _
        %v310 = vld [vmem:[%s299] sm:$0xff]
        %v311 = vld [vmem:[%s299 + $0x8] sm:$0xff]
        %v312 = vld [vmem:[%s299 + $0x10] sm:$0xff]
        %v313 = vld [vmem:[%s299 + $0x18] sm:$0xff]
        %v314 = vld [vmem:[%s299 + $0x20] sm:$0xff]
        %v315 = vld [vmem:[%s299 + $0x28] sm:$0xff]
        %v316 = vld [vmem:[%s299 + $0x30] sm:$0xff]
        %v317 = vld [vmem:[%s299 + $0x38] sm:$0xff]
        %v318 = vld [vmem:[%s299 + $0x40] sm:$0xff]
        %v319 = vld [vmem:[%s299 + $0x48] sm:$0xff]
        %v320 = vld [vmem:[%s299 + $0x50] sm:$0xff]
        %v321 = vld [vmem:[%s299 + $0x58] sm:$0xff]
        %v322 = vld [vmem:[%s299 + $0x60] sm:$0xff]
        %v323 = vld [vmem:[%s299 + $0x68] sm:$0xff]
        %v324 = vld [vmem:[%s299 + $0x70] sm:$0xff]
        %v325 = vld [vmem:[%s299 + $0x78] sm:$0xff]
        %v326 = vld [vmem:[%s299 + $0x80] sm:$0xff]
        %v327 = vld [vmem:[%s299 + $0x88] sm:$0xff]
        %v328 = vld [vmem:[%s299 + $0x90] sm:$0xff]
        %v329 = vld [vmem:[%s299 + $0x98] sm:$0xff]
        %v330 = vld [vmem:[%s299 + $0xa0] sm:$0xff]
        %v331 = vld [vmem:[%s299 + $0xa8] sm:$0xff]
        %v332 = vld [vmem:[%s299 + $0xb0] sm:$0xff]
        %v333 = vld [vmem:[%s299 + $0xb8] sm:$0xff]
        %v334 = vld [vmem:[%s299 + $0xc0] sm:$0xff]
        %v335 = vld [vmem:[%s299 + $0xc8] sm:$0xff]
        %v336 = vld [vmem:[%s299 + $0xd0] sm:$0xff]
        %v337 = vld [vmem:[%s299 + $0xd8] sm:$0xff]
        %v338 = vld [vmem:[%s299 + $0xe0] sm:$0xff]
        %v339 = vld [vmem:[%s299 + $0xe8] sm:$0xff]
        %v340 = vld [vmem:[%s299 + $0xf0] sm:$0xff]
        %v341 = vld [vmem:[%s299 + $0xf8] sm:$0xff]
        %v342 = vld [vmem:[%s299 + $0x100] sm:$0xff]
        %v343 = vld [vmem:[%s299 + $0x108] sm:$0xff]
        %v344 = vld [vmem:[%s299 + $0x110] sm:$0xff]
        %v345 = vld [vmem:[%s299 + $0x118] sm:$0xff]
        %v346 = vld [vmem:[%s299 + $0x120] sm:$0xff]
        %v347 = vld [vmem:[%s299 + $0x128] sm:$0xff]
        %v348 = vld [vmem:[%s299 + $0x130] sm:$0xff]
        %v349 = vld [vmem:[%s299 + $0x138] sm:$0xff]
        %v350 = vld [vmem:[%s299 + $0x140] sm:$0xff]
        %v351 = vld [vmem:[%s299 + $0x148] sm:$0xff]
        %v352 = vld [vmem:[%s299 + $0x150] sm:$0xff]
        %v353 = vld [vmem:[%s299 + $0x158] sm:$0xff]
        %v354 = vld [vmem:[%s299 + $0x160] sm:$0xff]
        %v355 = vld [vmem:[%s299 + $0x168] sm:$0xff]
        %v356 = vld [vmem:[%s299 + $0x170] sm:$0xff]
        %v357 = vld [vmem:[%s299 + $0x178] sm:$0xff]
        %v358 = vld [vmem:[%s299 + $0x180] sm:$0xff]
        %v359 = vld [vmem:[%s299 + $0x188] sm:$0xff]
        %v360 = vld [vmem:[%s299 + $0x190] sm:$0xff]
        %v361 = vld [vmem:[%s299 + $0x198] sm:$0xff]
        %v362 = vld [vmem:[%s299 + $0x1a0] sm:$0xff]
        %v363 = vld [vmem:[%s299 + $0x1a8] sm:$0xff]
        %v364 = vld [vmem:[%s299 + $0x1b0] sm:$0xff]
        %v365 = vld [vmem:[%s299 + $0x1b8] sm:$0xff]
        %v366 = vld [vmem:[%s299 + $0x1c0] sm:$0xff]
        %v367 = vld [vmem:[%s299 + $0x1c8] sm:$0xff]
        %v368 = vld [vmem:[%s299 + $0x1d0] sm:$0xff]
        %v369 = vld [vmem:[%s299 + $0x1d8] sm:$0xff]
        %v370 = vld [vmem:[%s299 + $0x1e0] sm:$0xff]
        %v371 = vld [vmem:[%s299 + $0x1e8] sm:$0xff]
        %v372 = vld [vmem:[%s299 + $0x1f0] sm:$0xff]
        %v373 = vld [vmem:[%s299 + $0x1f8] sm:$0xff]
        %v374 = vpack.c.bf16 %v311, %v310
        %v375 = vpack.c.bf16 %v313, %v312
        %v376 = vpack.c.bf16 %v315, %v314
        %v377 = vpack.c.bf16 %v317, %v316
        %v378 = vpack.c.bf16 %v319, %v318
        %v379 = vpack.c.bf16 %v321, %v320
        %v380 = vpack.c.bf16 %v323, %v322
        %v381 = vpack.c.bf16 %v325, %v324
        %v382 = vpack.c.bf16 %v327, %v326
        %v383 = vpack.c.bf16 %v329, %v328
        %v384 = vpack.c.bf16 %v331, %v330
        %v385 = vpack.c.bf16 %v333, %v332
        %v386 = vpack.c.bf16 %v335, %v334
        %v387 = vpack.c.bf16 %v337, %v336
        %v388 = vpack.c.bf16 %v339, %v338
        %v389 = vpack.c.bf16 %v341, %v340
        %v390 = vpack.c.bf16 %v343, %v342
        %v391 = vpack.c.bf16 %v345, %v344
        %v392 = vpack.c.bf16 %v347, %v346
        %v393 = vpack.c.bf16 %v349, %v348
        %v394 = vpack.c.bf16 %v351, %v350
        %v395 = vpack.c.bf16 %v353, %v352
        %v396 = vpack.c.bf16 %v355, %v354
        %v397 = vpack.c.bf16 %v357, %v356
        %v398 = vpack.c.bf16 %v359, %v358
        %v399 = vpack.c.bf16 %v361, %v360
        %v400 = vpack.c.bf16 %v363, %v362
        %v401 = vpack.c.bf16 %v365, %v364
        %v402 = vpack.c.bf16 %v367, %v366
        %v403 = vpack.c.bf16 %v369, %v368
        %v404 = vpack.c.bf16 %v371, %v370
        %v405 = vpack.c.bf16 %v373, %v372
        %v406 = vld [vmem:[#allocation2] sm:$0xff]
        %v407 = vld [vmem:[%s275] sm:$0xff]
        %v408 = vld [vmem:[%s275 + $0x8] sm:$0xff]
        %v409 = vld [vmem:[%s275 + $0x10] sm:$0xff]
        %v410 = vld [vmem:[%s275 + $0x18] sm:$0xff]
        %v411 = vpack.c.bf16 %v407, %v407
        %v412 = vpack.c.bf16 %v408, %v408
        %v413 = vpack.c.bf16 %v409, %v409
        %v414 = vpack.c.bf16 %v410, %v410
        %415 = vmatprep.subr.bf16.mxu0 0
        %416 = vmatpush1.bf16.msra.mxu0 %v381
        %417 = vmatprep.subr.bf16.mxu0 0
        %418 = vmatpush1.bf16.msra.mxu0 %v380
        %419 = vmatprep.subr.bf16.mxu0 0
        %420 = vmatpush1.bf16.msra.mxu0 %v379
        %421 = vmatprep.subr.bf16.mxu0 0
        %422 = vmatpush1.bf16.msra.mxu0 %v378
        %423 = vmatprep.subr.bf16.mxu0 0
        %424 = vmatpush1.bf16.msra.mxu0 %v377
        %425 = vmatprep.subr.bf16.mxu0 0
        %426 = vmatpush1.bf16.msra.mxu0 %v376
        %427 = vmatprep.subr.bf16.mxu0 0
        %428 = vmatpush1.bf16.msra.mxu0 %v375
        %429 = vmatprep.subr.bf16.mxu0 0
        %430 = vmatpush1.bf16.msra.mxu0 %v374
        %431 = vmatprep.subr.bf16.mxu0 0
        %432 = vmatpush2.bf16.msra.mxu0 %v389
        %433 = vmatprep.subr.bf16.mxu0 0
        %434 = vmatpush2.bf16.msra.mxu0 %v388
        %435 = vmatprep.subr.bf16.mxu0 0
        %436 = vmatpush2.bf16.msra.mxu0 %v387
        %437 = vmatprep.subr.bf16.mxu0 0
        %438 = vmatpush2.bf16.msra.mxu0 %v386
        %439 = vmatprep.subr.bf16.mxu0 0
        %440 = vmatpush2.bf16.msra.mxu0 %v385
        %441 = vmatprep.subr.bf16.mxu0 0
        %442 = vmatpush2.bf16.msra.mxu0 %v384
        %443 = vmatprep.subr.bf16.mxu0 0
        %444 = vmatpush2.bf16.msra.mxu0 %v383
        %445 = vmatprep.subr.bf16.mxu0 0
        %446 = vmatpush2.bf16.msra.mxu0 %v382
        %447 = vmatprep.mubr.bf16.mxu0 %v412
        %448 = vmatmul.mubr.bf16.gmra.mxu0 %v411
        %v449 = vpop.f32.mrf.mxu0
        %v450 = vadd.f32 0.0, %v449
        %v451 = vpop.f32.mrf.mxu0
        %v452 = vpop.f32.mrf.mxu0
        %v453 = vpop.f32.mrf.mxu0
        %454 = vdwg.mxu0
        %455 = vmatprep.subr.bf16.mxu0 0
        %456 = vmatpush1.bf16.msra.mxu0 %v397
        %457 = vmatprep.subr.bf16.mxu0 0
        %458 = vmatpush1.bf16.msra.mxu0 %v396
        %459 = vmatprep.subr.bf16.mxu0 0
        %460 = vmatpush1.bf16.msra.mxu0 %v395
        %461 = vmatprep.subr.bf16.mxu0 0
        %462 = vmatpush1.bf16.msra.mxu0 %v394
        %463 = vmatprep.subr.bf16.mxu0 0
        %464 = vmatpush1.bf16.msra.mxu0 %v393
        %465 = vmatprep.subr.bf16.mxu0 0
        %466 = vmatpush1.bf16.msra.mxu0 %v392
        %467 = vmatprep.subr.bf16.mxu0 0
        %468 = vmatpush1.bf16.msra.mxu0 %v391
        %469 = vmatprep.subr.bf16.mxu0 0
        %470 = vmatpush1.bf16.msra.mxu0 %v390
        %471 = vmatprep.subr.bf16.mxu0 0
        %472 = vmatpush2.bf16.msra.mxu0 %v405
        %473 = vmatprep.subr.bf16.mxu0 0
        %474 = vmatpush2.bf16.msra.mxu0 %v404
        %475 = vmatprep.subr.bf16.mxu0 0
        %476 = vmatpush2.bf16.msra.mxu0 %v403
        %477 = vmatprep.subr.bf16.mxu0 0
        %478 = vmatpush2.bf16.msra.mxu0 %v402
        %479 = vmatprep.subr.bf16.mxu0 0
        %480 = vmatpush2.bf16.msra.mxu0 %v401
        %481 = vmatprep.subr.bf16.mxu0 0
        %482 = vmatpush2.bf16.msra.mxu0 %v400
        %483 = vmatprep.subr.bf16.mxu0 0
        %484 = vmatpush2.bf16.msra.mxu0 %v399
        %485 = vmatprep.subr.bf16.mxu0 0
        %486 = vmatpush2.bf16.msra.mxu0 %v398
        %487 = vmatprep.mubr.bf16.mxu0 %v414
        %488 = vmatmul.mubr.bf16.gmra.mxu0 %v413
        %v489 = vpop.f32.mrf.mxu0
        %v490 = vadd.f32 %v450, %v489
        %v491 = vpop.f32.mrf.mxu0
        %v492 = vpop.f32.mrf.mxu0
        %v493 = vpop.f32.mrf.mxu0
        %494 = vdwg.mxu0
        %v495 = vadd.f32 %v406, %v490
        %496 = vst [vmem:[#allocation2] sm:$0xff] %v495
        %v497 = vld [vmem:[#allocation3] sm:$0xff]
        %v498 = vld [vmem:[%s281] sm:$0xff]
        %v499 = vld [vmem:[%s281 + $0x8] sm:$0xff]
        %v500 = vld [vmem:[%s281 + $0x10] sm:$0xff]
        %v501 = vld [vmem:[%s281 + $0x18] sm:$0xff]
        %v502 = vpack.c.bf16 %v498, %v498
        %v503 = vpack.c.bf16 %v499, %v499
        %v504 = vpack.c.bf16 %v500, %v500
        %v505 = vpack.c.bf16 %v501, %v501
        %506 = vmatprep.subr.bf16.mxu0 0
        %507 = vmatpush1.bf16.msra.mxu0 %v381
        %508 = vmatprep.subr.bf16.mxu0 0
        %509 = vmatpush1.bf16.msra.mxu0 %v380
        %510 = vmatprep.subr.bf16.mxu0 0
        %511 = vmatpush1.bf16.msra.mxu0 %v379
        %512 = vmatprep.subr.bf16.mxu0 0
        %513 = vmatpush1.bf16.msra.mxu0 %v378
        %514 = vmatprep.subr.bf16.mxu0 0
        %515 = vmatpush1.bf16.msra.mxu0 %v377
        %516 = vmatprep.subr.bf16.mxu0 0
        %517 = vmatpush1.bf16.msra.mxu0 %v376
        %518 = vmatprep.subr.bf16.mxu0 0
        %519 = vmatpush1.bf16.msra.mxu0 %v375
        %520 = vmatprep.subr.bf16.mxu0 0
        %521 = vmatpush1.bf16.msra.mxu0 %v374
        %522 = vmatprep.subr.bf16.mxu0 0
        %523 = vmatpush2.bf16.msra.mxu0 %v389
        %524 = vmatprep.subr.bf16.mxu0 0
        %525 = vmatpush2.bf16.msra.mxu0 %v388
        %526 = vmatprep.subr.bf16.mxu0 0
        %527 = vmatpush2.bf16.msra.mxu0 %v387
        %528 = vmatprep.subr.bf16.mxu0 0
        %529 = vmatpush2.bf16.msra.mxu0 %v386
        %530 = vmatprep.subr.bf16.mxu0 0
        %531 = vmatpush2.bf16.msra.mxu0 %v385
        %532 = vmatprep.subr.bf16.mxu0 0
        %533 = vmatpush2.bf16.msra.mxu0 %v384
        %534 = vmatprep.subr.bf16.mxu0 0
        %535 = vmatpush2.bf16.msra.mxu0 %v383
        %536 = vmatprep.subr.bf16.mxu0 0
        %537 = vmatpush2.bf16.msra.mxu0 %v382
        %538 = vmatprep.mubr.bf16.mxu0 %v503
        %539 = vmatmul.mubr.bf16.gmra.mxu0 %v502
        %v540 = vpop.f32.mrf.mxu0
        %v541 = vadd.f32 0.0, %v540
        %v542 = vpop.f32.mrf.mxu0
        %v543 = vpop.f32.mrf.mxu0
        %v544 = vpop.f32.mrf.mxu0
        %545 = vdwg.mxu0
        %546 = vmatprep.subr.bf16.mxu0 0
        %547 = vmatpush1.bf16.msra.mxu0 %v397
        %548 = vmatprep.subr.bf16.mxu0 0
        %549 = vmatpush1.bf16.msra.mxu0 %v396
        %550 = vmatprep.subr.bf16.mxu0 0
        %551 = vmatpush1.bf16.msra.mxu0 %v395
        %552 = vmatprep.subr.bf16.mxu0 0
        %553 = vmatpush1.bf16.msra.mxu0 %v394
        %554 = vmatprep.subr.bf16.mxu0 0
        %555 = vmatpush1.bf16.msra.mxu0 %v393
        %556 = vmatprep.subr.bf16.mxu0 0
        %557 = vmatpush1.bf16.msra.mxu0 %v392
        %558 = vmatprep.subr.bf16.mxu0 0
        %559 = vmatpush1.bf16.msra.mxu0 %v391
        %560 = vmatprep.subr.bf16.mxu0 0
        %561 = vmatpush1.bf16.msra.mxu0 %v390
        %562 = vmatprep.subr.bf16.mxu0 0
        %563 = vmatpush2.bf16.msra.mxu0 %v405
        %564 = vmatprep.subr.bf16.mxu0 0
        %565 = vmatpush2.bf16.msra.mxu0 %v404
        %566 = vmatprep.subr.bf16.mxu0 0
        %567 = vmatpush2.bf16.msra.mxu0 %v403
        %568 = vmatprep.subr.bf16.mxu0 0
        %569 = vmatpush2.bf16.msra.mxu0 %v402
        %570 = vmatprep.subr.bf16.mxu0 0
        %571 = vmatpush2.bf16.msra.mxu0 %v401
        %572 = vmatprep.subr.bf16.mxu0 0
        %573 = vmatpush2.bf16.msra.mxu0 %v400
        %574 = vmatprep.subr.bf16.mxu0 0
        %575 = vmatpush2.bf16.msra.mxu0 %v399
        %576 = vmatprep.subr.bf16.mxu0 0
        %577 = vmatpush2.bf16.msra.mxu0 %v398
        %578 = vmatprep.mubr.bf16.mxu0 %v505
        %579 = vmatmul.mubr.bf16.gmra.mxu0 %v504
        %v580 = vpop.f32.mrf.mxu0
        %v581 = vadd.f32 %v541, %v580
        %v582 = vpop.f32.mrf.mxu0
        %v583 = vpop.f32.mrf.mxu0
        %v584 = vpop.f32.mrf.mxu0
        %585 = vdwg.mxu0
        %v586 = vadd.f32 %v497, %v581
        %587 = vst [vmem:[#allocation3] sm:$0xff] %v586
        %v588 = vld [vmem:[#allocation4] sm:$0xff]
        %v589 = vld [vmem:[%s287] sm:$0xff]
        %v590 = vld [vmem:[%s287 + $0x8] sm:$0xff]
        %v591 = vld [vmem:[%s287 + $0x10] sm:$0xff]
        %v592 = vld [vmem:[%s287 + $0x18] sm:$0xff]
        %v593 = vpack.c.bf16 %v589, %v589
        %v594 = vpack.c.bf16 %v590, %v590
        %v595 = vpack.c.bf16 %v591, %v591
        %v596 = vpack.c.bf16 %v592, %v592
        %597 = vmatprep.subr.bf16.mxu0 0
        %598 = vmatpush1.bf16.msra.mxu0 %v381
        %599 = vmatprep.subr.bf16.mxu0 0
        %600 = vmatpush1.bf16.msra.mxu0 %v380
        %601 = vmatprep.subr.bf16.mxu0 0
        %602 = vmatpush1.bf16.msra.mxu0 %v379
        %603 = vmatprep.subr.bf16.mxu0 0
        %604 = vmatpush1.bf16.msra.mxu0 %v378
        %605 = vmatprep.subr.bf16.mxu0 0
        %606 = vmatpush1.bf16.msra.mxu0 %v377
        %607 = vmatprep.subr.bf16.mxu0 0
        %608 = vmatpush1.bf16.msra.mxu0 %v376
        %609 = vmatprep.subr.bf16.mxu0 0
        %610 = vmatpush1.bf16.msra.mxu0 %v375
        %611 = vmatprep.subr.bf16.mxu0 0
        %612 = vmatpush1.bf16.msra.mxu0 %v374
        %613 = vmatprep.subr.bf16.mxu0 0
        %614 = vmatpush2.bf16.msra.mxu0 %v389
        %615 = vmatprep.subr.bf16.mxu0 0
        %616 = vmatpush2.bf16.msra.mxu0 %v388
        %617 = vmatprep.subr.bf16.mxu0 0
        %618 = vmatpush2.bf16.msra.mxu0 %v387
        %619 = vmatprep.subr.bf16.mxu0 0
        %620 = vmatpush2.bf16.msra.mxu0 %v386
        %621 = vmatprep.subr.bf16.mxu0 0
        %622 = vmatpush2.bf16.msra.mxu0 %v385
        %623 = vmatprep.subr.bf16.mxu0 0
        %624 = vmatpush2.bf16.msra.mxu0 %v384
        %625 = vmatprep.subr.bf16.mxu0 0
        %626 = vmatpush2.bf16.msra.mxu0 %v383
        %627 = vmatprep.subr.bf16.mxu0 0
        %628 = vmatpush2.bf16.msra.mxu0 %v382
        %629 = vmatprep.mubr.bf16.mxu0 %v594
        %630 = vmatmul.mubr.bf16.gmra.mxu0 %v593
        %v631 = vpop.f32.mrf.mxu0
        %v632 = vadd.f32 0.0, %v631
        %v633 = vpop.f32.mrf.mxu0
        %v634 = vpop.f32.mrf.mxu0
        %v635 = vpop.f32.mrf.mxu0
        %636 = vdwg.mxu0
        %637 = vmatprep.subr.bf16.mxu0 0
        %638 = vmatpush1.bf16.msra.mxu0 %v397
        %639 = vmatprep.subr.bf16.mxu0 0
        %640 = vmatpush1.bf16.msra.mxu0 %v396
        %641 = vmatprep.subr.bf16.mxu0 0
        %642 = vmatpush1.bf16.msra.mxu0 %v395
        %643 = vmatprep.subr.bf16.mxu0 0
        %644 = vmatpush1.bf16.msra.mxu0 %v394
        %645 = vmatprep.subr.bf16.mxu0 0
        %646 = vmatpush1.bf16.msra.mxu0 %v393
        %647 = vmatprep.subr.bf16.mxu0 0
        %648 = vmatpush1.bf16.msra.mxu0 %v392
        %649 = vmatprep.subr.bf16.mxu0 0
        %650 = vmatpush1.bf16.msra.mxu0 %v391
        %651 = vmatprep.subr.bf16.mxu0 0
        %652 = vmatpush1.bf16.msra.mxu0 %v390
        %653 = vmatprep.subr.bf16.mxu0 0
        %654 = vmatpush2.bf16.msra.mxu0 %v405
        %655 = vmatprep.subr.bf16.mxu0 0
        %656 = vmatpush2.bf16.msra.mxu0 %v404
        %657 = vmatprep.subr.bf16.mxu0 0
        %658 = vmatpush2.bf16.msra.mxu0 %v403
        %659 = vmatprep.subr.bf16.mxu0 0
        %660 = vmatpush2.bf16.msra.mxu0 %v402
        %661 = vmatprep.subr.bf16.mxu0 0
        %662 = vmatpush2.bf16.msra.mxu0 %v401
        %663 = vmatprep.subr.bf16.mxu0 0
        %664 = vmatpush2.bf16.msra.mxu0 %v400
        %665 = vmatprep.subr.bf16.mxu0 0
        %666 = vmatpush2.bf16.msra.mxu0 %v399
        %667 = vmatprep.subr.bf16.mxu0 0
        %668 = vmatpush2.bf16.msra.mxu0 %v398
        %669 = vmatprep.mubr.bf16.mxu0 %v596
        %670 = vmatmul.mubr.bf16.gmra.mxu0 %v595
        %v671 = vpop.f32.mrf.mxu0
        %v672 = vadd.f32 %v632, %v671
        %v673 = vpop.f32.mrf.mxu0
        %v674 = vpop.f32.mrf.mxu0
        %v675 = vpop.f32.mrf.mxu0
        %676 = vdwg.mxu0
        %v677 = vadd.f32 %v588, %v672
        %678 = vst [vmem:[#allocation4] sm:$0xff] %v677
        %v679 = vld [vmem:[#allocation5] sm:$0xff]
        %v680 = vld [vmem:[%s293] sm:$0xff]
        %v681 = vld [vmem:[%s293 + $0x8] sm:$0xff]
        %v682 = vld [vmem:[%s293 + $0x10] sm:$0xff]
        %v683 = vld [vmem:[%s293 + $0x18] sm:$0xff]
        %v684 = vpack.c.bf16 %v680, %v680
        %v685 = vpack.c.bf16 %v681, %v681
        %v686 = vpack.c.bf16 %v682, %v682
        %v687 = vpack.c.bf16 %v683, %v683
        %688 = vmatprep.subr.bf16.mxu0 0
        %689 = vmatpush1.bf16.msra.mxu0 %v381
        %690 = vmatprep.subr.bf16.mxu0 0
        %691 = vmatpush1.bf16.msra.mxu0 %v380
        %692 = vmatprep.subr.bf16.mxu0 0
        %693 = vmatpush1.bf16.msra.mxu0 %v379
        %694 = vmatprep.subr.bf16.mxu0 0
        %695 = vmatpush1.bf16.msra.mxu0 %v378
        %696 = vmatprep.subr.bf16.mxu0 0
        %697 = vmatpush1.bf16.msra.mxu0 %v377
        %698 = vmatprep.subr.bf16.mxu0 0
        %699 = vmatpush1.bf16.msra.mxu0 %v376
        %700 = vmatprep.subr.bf16.mxu0 0
        %701 = vmatpush1.bf16.msra.mxu0 %v375
        %702 = vmatprep.subr.bf16.mxu0 0
        %703 = vmatpush1.bf16.msra.mxu0 %v374
        %704 = vmatprep.subr.bf16.mxu0 0
        %705 = vmatpush2.bf16.msra.mxu0 %v389
        %706 = vmatprep.subr.bf16.mxu0 0
        %707 = vmatpush2.bf16.msra.mxu0 %v388
        %708 = vmatprep.subr.bf16.mxu0 0
        %709 = vmatpush2.bf16.msra.mxu0 %v387
        %710 = vmatprep.subr.bf16.mxu0 0
        %711 = vmatpush2.bf16.msra.mxu0 %v386
        %712 = vmatprep.subr.bf16.mxu0 0
        %713 = vmatpush2.bf16.msra.mxu0 %v385
        %714 = vmatprep.subr.bf16.mxu0 0
        %715 = vmatpush2.bf16.msra.mxu0 %v384
        %716 = vmatprep.subr.bf16.mxu0 0
        %717 = vmatpush2.bf16.msra.mxu0 %v383
        %718 = vmatprep.subr.bf16.mxu0 0
        %719 = vmatpush2.bf16.msra.mxu0 %v382
        %720 = vmatprep.mubr.bf16.mxu0 %v685
        %721 = vmatmul.mubr.bf16.gmra.mxu0 %v684
        %v722 = vpop.f32.mrf.mxu0
        %v723 = vadd.f32 0.0, %v722
        %v724 = vpop.f32.mrf.mxu0
        %v725 = vpop.f32.mrf.mxu0
        %v726 = vpop.f32.mrf.mxu0
        %727 = vdwg.mxu0
        %728 = vmatprep.subr.bf16.mxu0 0
        %729 = vmatpush1.bf16.msra.mxu0 %v397
        %730 = vmatprep.subr.bf16.mxu0 0
        %731 = vmatpush1.bf16.msra.mxu0 %v396
        %732 = vmatprep.subr.bf16.mxu0 0
        %733 = vmatpush1.bf16.msra.mxu0 %v395
        %734 = vmatprep.subr.bf16.mxu0 0
        %735 = vmatpush1.bf16.msra.mxu0 %v394
        %736 = vmatprep.subr.bf16.mxu0 0
        %737 = vmatpush1.bf16.msra.mxu0 %v393
        %738 = vmatprep.subr.bf16.mxu0 0
        %739 = vmatpush1.bf16.msra.mxu0 %v392
        %740 = vmatprep.subr.bf16.mxu0 0
        %741 = vmatpush1.bf16.msra.mxu0 %v391
        %742 = vmatprep.subr.bf16.mxu0 0
        %743 = vmatpush1.bf16.msra.mxu0 %v390
        %744 = vmatprep.subr.bf16.mxu0 0
        %745 = vmatpush2.bf16.msra.mxu0 %v405
        %746 = vmatprep.subr.bf16.mxu0 0
        %747 = vmatpush2.bf16.msra.mxu0 %v404
        %748 = vmatprep.subr.bf16.mxu0 0
        %749 = vmatpush2.bf16.msra.mxu0 %v403
        %750 = vmatprep.subr.bf16.mxu0 0
        %751 = vmatpush2.bf16.msra.mxu0 %v402
        %752 = vmatprep.subr.bf16.mxu0 0
        %753 = vmatpush2.bf16.msra.mxu0 %v401
        %754 = vmatprep.subr.bf16.mxu0 0
        %755 = vmatpush2.bf16.msra.mxu0 %v400
        %756 = vmatprep.subr.bf16.mxu0 0
        %757 = vmatpush2.bf16.msra.mxu0 %v399
        %758 = vmatprep.subr.bf16.mxu0 0
        %759 = vmatpush2.bf16.msra.mxu0 %v398
        %760 = vmatprep.mubr.bf16.mxu0 %v687
        %761 = vmatmul.mubr.bf16.gmra.mxu0 %v686
        %v762 = vpop.f32.mrf.mxu0
        %v763 = vadd.f32 %v723, %v762
        %v764 = vpop.f32.mrf.mxu0
        %v765 = vpop.f32.mrf.mxu0
        %v766 = vpop.f32.mrf.mxu0
        %767 = vdwg.mxu0
        %v768 = vadd.f32 %v679, %v763
        %769 = vst [vmem:[#allocation5] sm:$0xff] %v768
        %p770 = scmp.eq.s32.totalorder %s17, 1
        // Predicated region
        $region45: #{spectral_forward.1} parent=39 // pred_check
          %p771 = pneg %p770
        $region46: #{spectral_forward.1} parent=39 // pred_check_branch
          %773 = sbr.rel (%p771) target = $region48
        $region47: #{spectral_forward.1} parent=39 // pred_region
          %v774 = vld [vmem:[#allocation2] sm:$0xff]
          %v775 = vmul.f32 %v774, %v774
          %776 = vadd.xlane.f32.xlu0 %v775
          %v777 = vpop.xlane.xlu0 %776
          %vm778 = vcmp.lt.f32.partialorder %v777, 1.0
          %v779 = vmax.f32 %v777, 1e-24
          %v780 = vrsqrt.pop %v779
          %v781 = vsel %vm778, 1.0, %v780
          %v782 = vmul.f32 %v774, %v781
          %v783 = vld [vmem:[#allocation3] sm:$0xff]
          %v784 = vmul.f32 %v783, %v783
          %785 = vadd.xlane.f32.xlu0 %v784
          %v786 = vpop.xlane.xlu0 %785
          %vm787 = vcmp.lt.f32.partialorder %v786, 1.0
          %v788 = vmax.f32 %v786, 1e-24
          %v789 = vrsqrt.pop %v788
          %v790 = vsel %vm787, 1.0, %v789
          %v791 = vmul.f32 %v783, %v790
          %v792 = vld [vmem:[#allocation4] sm:$0xff]
          %v793 = vmul.f32 %v792, %v792
          %794 = vadd.xlane.f32.xlu0 %v793
          %v795 = vpop.xlane.xlu0 %794
          %vm796 = vcmp.lt.f32.partialorder %v795, 1.0
          %v797 = vmax.f32 %v795, 1e-24
          %v798 = vrsqrt.pop %v797
          %v799 = vsel %vm796, 1.0, %v798
          %v800 = vmul.f32 %v792, %v799
          %v801 = vld [vmem:[#allocation5] sm:$0xff]
          %v802 = vmul.f32 %v801, %v801
          %803 = vadd.xlane.f32.xlu0 %v802
          %v804 = vpop.xlane.xlu0 %803
          %vm805 = vcmp.lt.f32.partialorder %v804, 1.0
          %v806 = vmax.f32 %v804, 1e-24
          %v807 = vrsqrt.pop %v806
          %v808 = vsel %vm805, 1.0, %v807
          %v809 = vmul.f32 %v801, %v808
          %v810 = vmul.f32 %v782, %v800
          %v811 = vmul.f32 %v791, %v809
          %812 = vadd.xlane.f32.xlu0 %v810
          %v813 = vpop.xlane.xlu0 %812
          %814 = vadd.xlane.f32.xlu0 %v811
          %v815 = vpop.xlane.xlu0 %814
          %v816 = vrot.slane %v813, 4
          %v817 = vadd.f32 %v813, %v816
          %v818 = vrot.slane %v817, 2
          %v819 = vadd.f32 %v817, %v818
          %v820 = vrot.slane %v819, 1
          %v821 = vadd.f32 %v819, %v820
          %s822 = vtos %v821
          %v823 = vrot.slane %v815, 4
          %v824 = vadd.f32 %v815, %v823
          %v825 = vrot.slane %v824, 2
          %v826 = vadd.f32 %v824, %v825
          %v827 = vrot.slane %v826, 1
          %v828 = vadd.f32 %v826, %v827
          %s829 = vtos %v828
          %s830 = sadd.f32 %s822, %s829
          %s831 = smul.f32 %s830, -2.0
          %v832 = vrcp.pop 16.0
          %s833 = vtos %v832
          %s834 = smul.f32 %s831, %s833
          %835 = vmatprep.subr.mxu0 0.0
          %836 = vmatpush1.xpose.msra.mxu0 0.0
          %837 = vmatprep.subr.mxu0 0.0
          %838 = vmatpush1.xpose.msra.mxu0 0.0
          %839 = vmatprep.subr.mxu0 0.0
          %840 = vmatpush1.xpose.msra.mxu0 0.0
          %841 = vmatprep.subr.mxu0 0.0
          %842 = vmatpush1.xpose.msra.mxu0 0.0
          %843 = vmatprep.subr.mxu0 0.0
          %844 = vmatpush1.xpose.msra.mxu0 0.0
          %845 = vmatprep.subr.mxu0 0.0
          %846 = vmatpush1.xpose.msra.mxu0 0.0
          %847 = vmatprep.subr.mxu0 0.0
          %848 = vmatpush1.xpose.msra.mxu0 0.0
          %849 = vmatprep.subr.mxu0 0.0
          %850 = vmatpush1.xpose.msra.mxu0 0.0
          %851 = vmatprep.subr.mxu0 0.0
          %852 = vmatpush1.xpose.msra.mxu0 0.0
          %853 = vmatprep.subr.mxu0 0.0
          %854 = vmatpush1.xpose.msra.mxu0 0.0
          %855 = vmatprep.subr.mxu0 0.0
          %856 = vmatpush1.xpose.msra.mxu0 0.0
          %857 = vmatprep.subr.mxu0 0.0
          %858 = vmatpush1.xpose.msra.mxu0 0.0
          %859 = vmatprep.subr.mxu0 0.0
          %860 = vmatpush1.xpose.msra.mxu0 0.0
          %861 = vmatprep.subr.mxu0 0.0
          %862 = vmatpush1.xpose.msra.mxu0 0.0
          %863 = vmatprep.subr.mxu0 0.0
          %864 = vmatpush1.xpose.msra.mxu0 0.0
          %865 = vmatprep.subr.mxu0 0.0
          %866 = vmatpush1.xpose.msra.mxu0 %v800
          %867 = vmatprep.subr.mxu0 0.0
          %868 = vmatpush2.xpose.msra.mxu0 0.0
          %869 = vmatprep.subr.mxu0 0.0
          %870 = vmatpush2.xpose.msra.mxu0 0.0
          %871 = vmatprep.subr.mxu0 0.0
          %872 = vmatpush2.xpose.msra.mxu0 0.0
          %873 = vmatprep.subr.mxu0 0.0
          %874 = vmatpush2.xpose.msra.mxu0 0.0
          %875 = vmatprep.subr.mxu0 0.0
          %876 = vmatpush2.xpose.msra.mxu0 0.0
          %877 = vmatprep.subr.mxu0 0.0
          %878 = vmatpush2.xpose.msra.mxu0 0.0
          %879 = vmatprep.subr.mxu0 0.0
          %880 = vmatpush2.xpose.msra.mxu0 0.0
          %881 = vmatprep.subr.mxu0 0.0
          %882 = vmatpush2.xpose.msra.mxu0 0.0
          %883 = vmatprep.subr.mxu0 0.0
          %884 = vmatpush2.xpose.msra.mxu0 0.0
          %885 = vmatprep.subr.mxu0 0.0
          %886 = vmatpush2.xpose.msra.mxu0 0.0
          %887 = vmatprep.subr.mxu0 0.0
          %888 = vmatpush2.xpose.msra.mxu0 0.0
          %889 = vmatprep.subr.mxu0 0.0
          %890 = vmatpush2.xpose.msra.mxu0 0.0
          %891 = vmatprep.subr.mxu0 0.0
          %892 = vmatpush2.xpose.msra.mxu0 0.0
          %893 = vmatprep.subr.mxu0 0.0
          %894 = vmatpush2.xpose.msra.mxu0 0.0
          %895 = vmatprep.subr.mxu0 0.0
          %896 = vmatpush2.xpose.msra.mxu0 0.0
          %897 = vmatprep.subr.mxu0 0.0
          %898 = vmatpush2.xpose.msra.mxu0 0.0
          %899 = vmatprep.mubr.f32.mxu0 0.0
          %900 = vmatmul.mubr.f32.gmra.mxu0 %v782
          %v901 = vpop.f32.mrf.mxu0
          %v902 = vadd.f32 0.0, %v901
          %v903 = vpop.f32.mrf.mxu0
          %904 = vdwg.mxu0
          %v905 = vmul.f32 %v902, %v902
          %vm906 = vcmask 64512
          %v907 = vsel %vm906, %v905, 0.0
          %908 = vadd.xlane.f32.xlu0 %v907
          %v909 = vpop.xlane.xlu0 %908
          %v910 = vrot.slane %v909, 4
          %v911 = vadd.f32 %v909, %v910
          %v912 = vrot.slane %v911, 2
          %v913 = vadd.f32 %v911, %v912
          %v914 = vrot.slane %v913, 1
          %v915 = vadd.f32 %v913, %v914
          %s916 = vtos %v915
          %917 = vmatprep.subr.mxu0 0.0
          %918 = vmatpush1.xpose.msra.mxu0 0.0
          %919 = vmatprep.subr.mxu0 0.0
          %920 = vmatpush1.xpose.msra.mxu0 0.0
          %921 = vmatprep.subr.mxu0 0.0
          %922 = vmatpush1.xpose.msra.mxu0 0.0
          %923 = vmatprep.subr.mxu0 0.0
          %924 = vmatpush1.xpose.msra.mxu0 0.0
          %925 = vmatprep.subr.mxu0 0.0
          %926 = vmatpush1.xpose.msra.mxu0 0.0
          %927 = vmatprep.subr.mxu0 0.0
          %928 = vmatpush1.xpose.msra.mxu0 0.0
          %929 = vmatprep.subr.mxu0 0.0
          %930 = vmatpush1.xpose.msra.mxu0 0.0
          %931 = vmatprep.subr.mxu0 0.0
          %932 = vmatpush1.xpose.msra.mxu0 0.0
          %933 = vmatprep.subr.mxu0 0.0
          %934 = vmatpush1.xpose.msra.mxu0 0.0
          %935 = vmatprep.subr.mxu0 0.0
          %936 = vmatpush1.xpose.msra.mxu0 0.0
          %937 = vmatprep.subr.mxu0 0.0
          %938 = vmatpush1.xpose.msra.mxu0 0.0
          %939 = vmatprep.subr.mxu0 0.0
          %940 = vmatpush1.xpose.msra.mxu0 0.0
          %941 = vmatprep.subr.mxu0 0.0
          %942 = vmatpush1.xpose.msra.mxu0 0.0
          %943 = vmatprep.subr.mxu0 0.0
          %944 = vmatpush1.xpose.msra.mxu0 0.0
          %945 = vmatprep.subr.mxu0 0.0
          %946 = vmatpush1.xpose.msra.mxu0 0.0
          %947 = vmatprep.subr.mxu0 0.0
          %948 = vmatpush1.xpose.msra.mxu0 %v809
          %949 = vmatprep.subr.mxu0 0.0
          %950 = vmatpush2.xpose.msra.mxu0 0.0
          %951 = vmatprep.subr.mxu0 0.0
          %952 = vmatpush2.xpose.msra.mxu0 0.0
          %953 = vmatprep.subr.mxu0 0.0
          %954 = vmatpush2.xpose.msra.mxu0 0.0
          %955 = vmatprep.subr.mxu0 0.0
          %956 = vmatpush2.xpose.msra.mxu0 0.0
          %957 = vmatprep.subr.mxu0 0.0
          %958 = vmatpush2.xpose.msra.mxu0 0.0
          %959 = vmatprep.subr.mxu0 0.0
          %960 = vmatpush2.xpose.msra.mxu0 0.0
          %961 = vmatprep.subr.mxu0 0.0
          %962 = vmatpush2.xpose.msra.mxu0 0.0
          %963 = vmatprep.subr.mxu0 0.0
          %964 = vmatpush2.xpose.msra.mxu0 0.0
          %965 = vmatprep.subr.mxu0 0.0
          %966 = vmatpush2.xpose.msra.mxu0 0.0
          %967 = vmatprep.subr.mxu0 0.0
          %968 = vmatpush2.xpose.msra.mxu0 0.0
          %969 = vmatprep.subr.mxu0 0.0
          %970 = vmatpush2.xpose.msra.mxu0 0.0
          %971 = vmatprep.subr.mxu0 0.0
          %972 = vmatpush2.xpose.msra.mxu0 0.0
          %973 = vmatprep.subr.mxu0 0.0
          %974 = vmatpush2.xpose.msra.mxu0 0.0
          %975 = vmatprep.subr.mxu0 0.0
          %976 = vmatpush2.xpose.msra.mxu0 0.0
          %977 = vmatprep.subr.mxu0 0.0
          %978 = vmatpush2.xpose.msra.mxu0 0.0
          %979 = vmatprep.subr.mxu0 0.0
          %980 = vmatpush2.xpose.msra.mxu0 0.0
          %981 = vmatprep.mubr.f32.mxu0 0.0
          %982 = vmatmul.mubr.f32.gmra.mxu0 %v782
          %v983 = vpop.f32.mrf.mxu0
          %v984 = vadd.f32 0.0, %v983
          %v985 = vpop.f32.mrf.mxu0
          %986 = vdwg.mxu0
          %v987 = vmul.f32 %v984, %v984
          %v988 = vsel %vm906, %v987, 0.0
          %989 = vadd.xlane.f32.xlu0 %v988
          %v990 = vpop.xlane.xlu0 %989
          %v991 = vrot.slane %v990, 4
          %v992 = vadd.f32 %v990, %v991
          %v993 = vrot.slane %v992, 2
          %v994 = vadd.f32 %v992, %v993
          %v995 = vrot.slane %v994, 1
          %v996 = vadd.f32 %v994, %v995
          %s997 = vtos %v996
          %s998 = sadd.f32 %s916, %s997
          %999 = vmatprep.subr.mxu0 0.0
          %1000 = vmatpush1.xpose.msra.mxu0 0.0
          %1001 = vmatprep.subr.mxu0 0.0
          %1002 = vmatpush1.xpose.msra.mxu0 0.0
          %1003 = vmatprep.subr.mxu0 0.0
          %1004 = vmatpush1.xpose.msra.mxu0 0.0
          %1005 = vmatprep.subr.mxu0 0.0
          %1006 = vmatpush1.xpose.msra.mxu0 0.0
          %1007 = vmatprep.subr.mxu0 0.0
          %1008 = vmatpush1.xpose.msra.mxu0 0.0
          %1009 = vmatprep.subr.mxu0 0.0
          %1010 = vmatpush1.xpose.msra.mxu0 0.0
          %1011 = vmatprep.subr.mxu0 0.0
          %1012 = vmatpush1.xpose.msra.mxu0 0.0
          %1013 = vmatprep.subr.mxu0 0.0
          %1014 = vmatpush1.xpose.msra.mxu0 0.0
          %1015 = vmatprep.subr.mxu0 0.0
          %1016 = vmatpush1.xpose.msra.mxu0 0.0
          %1017 = vmatprep.subr.mxu0 0.0
          %1018 = vmatpush1.xpose.msra.mxu0 0.0
          %1019 = vmatprep.subr.mxu0 0.0
          %1020 = vmatpush1.xpose.msra.mxu0 0.0
          %1021 = vmatprep.subr.mxu0 0.0
          %1022 = vmatpush1.xpose.msra.mxu0 0.0
          %1023 = vmatprep.subr.mxu0 0.0
          %1024 = vmatpush1.xpose.msra.mxu0 0.0
          %1025 = vmatprep.subr.mxu0 0.0
          %1026 = vmatpush1.xpose.msra.mxu0 0.0
          %1027 = vmatprep.subr.mxu0 0.0
          %1028 = vmatpush1.xpose.msra.mxu0 0.0
          %1029 = vmatprep.subr.mxu0 0.0
          %1030 = vmatpush1.xpose.msra.mxu0 %v800
          %1031 = vmatprep.subr.mxu0 0.0
          %1032 = vmatpush2.xpose.msra.mxu0 0.0
          %1033 = vmatprep.subr.mxu0 0.0
          %1034 = vmatpush2.xpose.msra.mxu0 0.0
          %1035 = vmatprep.subr.mxu0 0.0
          %1036 = vmatpush2.xpose.msra.mxu0 0.0
          %1037 = vmatprep.subr.mxu0 0.0
          %1038 = vmatpush2.xpose.msra.mxu0 0.0
          %1039 = vmatprep.subr.mxu0 0.0
          %1040 = vmatpush2.xpose.msra.mxu0 0.0
          %1041 = vmatprep.subr.mxu0 0.0
          %1042 = vmatpush2.xpose.msra.mxu0 0.0
          %1043 = vmatprep.subr.mxu0 0.0
          %1044 = vmatpush2.xpose.msra.mxu0 0.0
          %1045 = vmatprep.subr.mxu0 0.0
          %1046 = vmatpush2.xpose.msra.mxu0 0.0
          %1047 = vmatprep.subr.mxu0 0.0
          %1048 = vmatpush2.xpose.msra.mxu0 0.0
          %1049 = vmatprep.subr.mxu0 0.0
          %1050 = vmatpush2.xpose.msra.mxu0 0.0
          %1051 = vmatprep.subr.mxu0 0.0
          %1052 = vmatpush2.xpose.msra.mxu0 0.0
          %1053 = vmatprep.subr.mxu0 0.0
          %1054 = vmatpush2.xpose.msra.mxu0 0.0
          %1055 = vmatprep.subr.mxu0 0.0
          %1056 = vmatpush2.xpose.msra.mxu0 0.0
          %1057 = vmatprep.subr.mxu0 0.0
          %1058 = vmatpush2.xpose.msra.mxu0 0.0
          %1059 = vmatprep.subr.mxu0 0.0
          %1060 = vmatpush2.xpose.msra.mxu0 0.0
          %1061 = vmatprep.subr.mxu0 0.0
          %1062 = vmatpush2.xpose.msra.mxu0 0.0
          %1063 = vmatprep.mubr.f32.mxu0 0.0
          %1064 = vmatmul.mubr.f32.gmra.mxu0 %v791
          %v1065 = vpop.f32.mrf.mxu0
          %v1066 = vadd.f32 0.0, %v1065
          %v1067 = vpop.f32.mrf.mxu0
          %1068 = vdwg.mxu0
          %v1069 = vmul.f32 %v1066, %v1066
          %v1070 = vsel %vm906, %v1069, 0.0
          %1071 = vadd.xlane.f32.xlu0 %v1070
          %v1072 = vpop.xlane.xlu0 %1071
          %v1073 = vrot.slane %v1072, 4
          %v1074 = vadd.f32 %v1072, %v1073
          %v1075 = vrot.slane %v1074, 2
          %v1076 = vadd.f32 %v1074, %v1075
          %v1077 = vrot.slane %v1076, 1
          %v1078 = vadd.f32 %v1076, %v1077
          %s1079 = vtos %v1078
          %s1080 = sadd.f32 %s998, %s1079
          %1081 = vmatprep.subr.mxu0 0.0
          %1082 = vmatpush1.xpose.msra.mxu0 0.0
          %1083 = vmatprep.subr.mxu0 0.0
          %1084 = vmatpush1.xpose.msra.mxu0 0.0
          %1085 = vmatprep.subr.mxu0 0.0
          %1086 = vmatpush1.xpose.msra.mxu0 0.0
          %1087 = vmatprep.subr.mxu0 0.0
          %1088 = vmatpush1.xpose.msra.mxu0 0.0
          %1089 = vmatprep.subr.mxu0 0.0
          %1090 = vmatpush1.xpose.msra.mxu0 0.0
          %1091 = vmatprep.subr.mxu0 0.0
          %1092 = vmatpush1.xpose.msra.mxu0 0.0
          %1093 = vmatprep.subr.mxu0 0.0
          %1094 = vmatpush1.xpose.msra.mxu0 0.0
          %1095 = vmatprep.subr.mxu0 0.0
          %1096 = vmatpush1.xpose.msra.mxu0 0.0
          %1097 = vmatprep.subr.mxu0 0.0
          %1098 = vmatpush1.xpose.msra.mxu0 0.0
          %1099 = vmatprep.subr.mxu0 0.0
          %1100 = vmatpush1.xpose.msra.mxu0 0.0
          %1101 = vmatprep.subr.mxu0 0.0
          %1102 = vmatpush1.xpose.msra.mxu0 0.0
          %1103 = vmatprep.subr.mxu0 0.0
          %1104 = vmatpush1.xpose.msra.mxu0 0.0
          %1105 = vmatprep.subr.mxu0 0.0
          %1106 = vmatpush1.xpose.msra.mxu0 0.0
          %1107 = vmatprep.subr.mxu0 0.0
          %1108 = vmatpush1.xpose.msra.mxu0 0.0
          %1109 = vmatprep.subr.mxu0 0.0
          %1110 = vmatpush1.xpose.msra.mxu0 0.0
          %1111 = vmatprep.subr.mxu0 0.0
          %1112 = vmatpush1.xpose.msra.mxu0 %v809
          %1113 = vmatprep.subr.mxu0 0.0
          %1114 = vmatpush2.xpose.msra.mxu0 0.0
          %1115 = vmatprep.subr.mxu0 0.0
          %1116 = vmatpush2.xpose.msra.mxu0 0.0
          %1117 = vmatprep.subr.mxu0 0.0
          %1118 = vmatpush2.xpose.msra.mxu0 0.0
          %1119 = vmatprep.subr.mxu0 0.0
          %1120 = vmatpush2.xpose.msra.mxu0 0.0
          %1121 = vmatprep.subr.mxu0 0.0
          %1122 = vmatpush2.xpose.msra.mxu0 0.0
          %1123 = vmatprep.subr.mxu0 0.0
          %1124 = vmatpush2.xpose.msra.mxu0 0.0
          %1125 = vmatprep.subr.mxu0 0.0
          %1126 = vmatpush2.xpose.msra.mxu0 0.0
          %1127 = vmatprep.subr.mxu0 0.0
          %1128 = vmatpush2.xpose.msra.mxu0 0.0
          %1129 = vmatprep.subr.mxu0 0.0
          %1130 = vmatpush2.xpose.msra.mxu0 0.0
          %1131 = vmatprep.subr.mxu0 0.0
          %1132 = vmatpush2.xpose.msra.mxu0 0.0
          %1133 = vmatprep.subr.mxu0 0.0
          %1134 = vmatpush2.xpose.msra.mxu0 0.0
          %1135 = vmatprep.subr.mxu0 0.0
          %1136 = vmatpush2.xpose.msra.mxu0 0.0
          %1137 = vmatprep.subr.mxu0 0.0
          %1138 = vmatpush2.xpose.msra.mxu0 0.0
          %1139 = vmatprep.subr.mxu0 0.0
          %1140 = vmatpush2.xpose.msra.mxu0 0.0
          %1141 = vmatprep.subr.mxu0 0.0
          %1142 = vmatpush2.xpose.msra.mxu0 0.0
          %1143 = vmatprep.subr.mxu0 0.0
          %1144 = vmatpush2.xpose.msra.mxu0 0.0
          %1145 = vmatprep.mubr.f32.mxu0 0.0
          %1146 = vmatmul.mubr.f32.gmra.mxu0 %v791
          %v1147 = vpop.f32.mrf.mxu0
          %v1148 = vadd.f32 0.0, %v1147
          %v1149 = vpop.f32.mrf.mxu0
          %1150 = vdwg.mxu0
          %v1151 = vmul.f32 %v1148, %v1148
          %v1152 = vsel %vm906, %v1151, 0.0
          %1153 = vadd.xlane.f32.xlu0 %v1152
          %v1154 = vpop.xlane.xlu0 %1153
          %v1155 = vrot.slane %v1154, 4
          %v1156 = vadd.f32 %v1154, %v1155
          %v1157 = vrot.slane %v1156, 2
          %v1158 = vadd.f32 %v1156, %v1157
          %v1159 = vrot.slane %v1158, 1
          %v1160 = vadd.f32 %v1158, %v1159
          %s1161 = vtos %v1160
          %s1162 = sadd.f32 %s1080, %s1161
          %v1163 = vmul.f32 %v813, %v813
          %vm1164 = vcmask 7168
          %v1165 = vsel %vm1164, %v1163, 0.0
          %1166 = vadd.xlane.f32.xlu0 %v1165
          %v1167 = vpop.xlane.xlu0 %1166
          %v1168 = vrot.slane %v1167, 4
          %v1169 = vadd.f32 %v1167, %v1168
          %v1170 = vrot.slane %v1169, 2
          %v1171 = vadd.f32 %v1169, %v1170
          %v1172 = vrot.slane %v1171, 1
          %v1173 = vadd.f32 %v1171, %v1172
          %s1174 = vtos %v1173
          %v1175 = vmul.f32 %v815, %v815
          %v1176 = vsel %vm1164, %v1175, 0.0
          %1177 = vadd.xlane.f32.xlu0 %v1176
          %v1178 = vpop.xlane.xlu0 %1177
          %v1179 = vrot.slane %v1178, 4
          %v1180 = vadd.f32 %v1178, %v1179
          %v1181 = vrot.slane %v1180, 2
          %v1182 = vadd.f32 %v1180, %v1181
          %v1183 = vrot.slane %v1182, 1
          %v1184 = vadd.f32 %v1182, %v1183
          %s1185 = vtos %v1184
          %s1186 = sadd.f32 %s1174, %s1185
          %s1187 = ssub.f32 %s1162, %s1186
          %v1188 = vrcp.pop 240.0
          %s1189 = vtos %v1188
          %s1190 = smul.f32 %s1187, %s1189
          %s1191 = sadd.f32 %s834, %s1190
          %s1192 = scalar_lea.smem [#allocation6], 0
          %1193 = sst [smem:[%s1192]] %s1191
          %s1194 = scalar_lea.smem [#allocation6], 1
          %1195 = sst [smem:[%s1194]] %s834
          %s1196 = scalar_lea.smem [#allocation6], 2
          %1197 = sst [smem:[%s1196]] %s1190
        $region48: #{spectral_forward.1} parent=39 // pred_fallthru
          _
        // Predicated region
        $region49: #{spectral_forward.1} parent=39 // pred_check
          %p1198 = pneg %p160
        $region50: #{spectral_forward.1} parent=39 // pred_check_branch
          %1200 = sbr.rel (%p1198) target = $region52
        $region51: #{spectral_forward.1} parent=39 // pred_region
          %s1202 = ssub.s32 16, 16
          %1203 = vsyncadd [#allocation7], %s1202
          %s1205 = sshll.u32 %s5, 4
          %s1206 = int_to_ptr.vmem [resolvable:$true] %s1205
          %1208 = dma.smem_to_vmem [#allocation6], 16, %s1206, [#allocation7]
        $region52: #{spectral_forward.1} parent=39 // pred_fallthru
          _
        // Predicated region
        $region53: #{spectral_forward.1} parent=39 // pred_check
          %p1209 = pneg %p160
        $region54: #{spectral_forward.1} parent=39 // pred_check_branch
          %1211 = sbr.rel (%p1209) target = $region56
        $region55: #{spectral_forward.1} parent=39 // pred_region
          %1212 = dma.done [#allocation7], 16
        $region56: #{spectral_forward.1} parent=39 // pred_fallthru
          _
        %1213 = sfence
      $region40: #{spectral_forward.1} parent=5 // pred_fallthru
        _
      %p1214 = scmp.le.s32.totalorder 2, %s12
      // Predicated region
      $region57: #{spectral_forward.1} parent=5 // pred_check
        %p1215 = pneg %p1214
      $region58: #{spectral_forward.1} parent=5 // pred_check_branch
        %1217 = sbr.rel (%p1215) target = $region60
      $region59: #{spectral_forward.1} parent=5 // pred_region
        %s1218 = ssub.s32 %s12, 2
      $region60: #{spectral_forward.1} parent=5 // pred_fallthru
        _
    $region6: #{spectral_forward.1} parent=1 // loop_footer
      %s16 = sadd.s32 1, %s12
    $region7: #{spectral_forward.1} parent=1 // loop_footer_branch
      %11 = sbr.rel target = $region3
    $region8: #{spectral_forward.1} parent=1 // loop_exit
      _
    %1219 = vsyncpa [#allocation7], 1
    %s1220 = scalar_lea.sflag [#allocation7], 1
    %1221 = vsyncpa %s1220, 1

</llo_original>
